<compile_context>
chip_gen: v7x
topology: tpu7x:2x2x1
jax: 0.10.0
libtpu: 0.0.40
codegen_flags: <defaults>
</compile_context>

<pallas_src>
import math

import jax
import jax.numpy as jnp
from jax.experimental import pallas as pl
from jax.experimental.pallas import tpu as pltpu


# ---------------------------------------------------------------------------
# Kernels
# ---------------------------------------------------------------------------

def _cauchy_fulld_kernel(c_ref, x1_ref, x2_ref, a2s_ref, b2s_ref, o_ref):
    # x1_ref: (tm, D)  x2_ref: (tn, D)  a2s_ref: (tm, 1)  b2s_ref: (1, tn)
    prod = jax.lax.dot_general(
        x1_ref[...], x2_ref[...],
        dimension_numbers=(((1,), (1,)), ((), ())),
        preferred_element_type=jnp.float32)                  # (tm, tn) on the MXU
    # denom = 1 + dis2/s = (|x1|^2/s) + (1 + |x2|^2/s) + (-2/s)*prod
    denom = (a2s_ref[...] + b2s_ref[...]) + c_ref[0] * prod
    # Guard f32 cancellation (dis2 slightly < 0 for near-duplicate rows).
    denom = jnp.maximum(denom, 1.0)
    # EUP approximate reciprocal (~1e-4 relative error) instead of a VALU divide.
    o_ref[...] = pl.reciprocal(denom, approx=True).astype(o_ref.dtype)


def _cauchy_ktiled_kernel(c_ref, x1_ref, x2_ref, a2s_ref, b2s_ref, o_ref, acc_ref):
    # Large-D fallback: contraction dim tiled along an "arbitrary" grid axis.
    k = pl.program_id(3)

    @pl.when(k == 0)
    def _():
        acc_ref[...] = jnp.zeros_like(acc_ref)

    acc_ref[...] += jax.lax.dot_general(
        x1_ref[...], x2_ref[...],
        dimension_numbers=(((1,), (1,)), ((), ())),
        preferred_element_type=jnp.float32)

    @pl.when(k == pl.num_programs(3) - 1)
    def _():
        denom = (a2s_ref[...] + b2s_ref[...]) + c_ref[0] * acc_ref[...]
        denom = jnp.maximum(denom, 1.0)
        o_ref[...] = pl.reciprocal(denom, approx=True).astype(o_ref.dtype)


# ---------------------------------------------------------------------------
# Tile selection
# ---------------------------------------------------------------------------

# Conservative working-set budget: fits v7x's 32 MiB scoped / 64 MiB physical
# VMEM (v5e/v6e have 128 MiB and are never the constraint).
_VMEM_BUDGET_BYTES = 28 * 1024 * 1024


def _round_up(x, m):
    return -(-x // m) * m


def _fit(size, tile):
    """Full-extent block if the dim fits in one tile, otherwise the aligned tile."""
    return size if size <= tile else tile


def _select_config(B, M, N, D, in_bytes, out_bytes):
    """Returns (tm, tn, tk, vmem_need_bytes); tk is None for the full-D path."""

    def need_fulld(tm, tn):
        # double-buffered x1/x2 tiles + norm vectors + output tile
        return 2 * ((tm + tn) * D * in_bytes + (tm + tn) * 4 + tm * tn * out_bytes)

    # Bias toward larger tm when D is big: x2 is re-streamed ceil(M/tm) times
    # from HBM, so tm controls the dominant read stream.
    if D >= 512:
        cands = [(1024, 512), (1024, 256), (512, 512), (512, 256),
                 (256, 256), (256, 128), (128, 128)]
    else:
        cands = [(512, 512), (512, 256), (256, 256), (256, 128), (128, 128)]

    choice = None
    for tm, tn in cands:
        tm_e, tn_e = _fit(M, tm), _fit(N, tn)
        need = need_fulld(tm_e, tn_e)
        if need <= _VMEM_BUDGET_BYTES:
            choice = (tm_e, tn_e, None, need)
            break

    if choice is None:
        # Huge D: K-tile the contraction with an f32 accumulator scratch.
        tk = 512
        for tm, tn in [(512, 512), (512, 256), (256, 256), (256, 128), (128, 128)]:
            tm_e, tn_e, tk_e = _fit(M, tm), _fit(N, tn), _fit(D, tk)
            need = (2 * ((tm_e + tn_e) * tk_e * in_bytes + (tm_e + tn_e) * 4
                         + tm_e * tn_e * out_bytes)
                    + tm_e * tn_e * 4)
            if need <= _VMEM_BUDGET_BYTES:
                choice = (tm_e, tn_e, tk_e, need)
                break
        if choice is None:
            tm_e, tn_e, tk_e = _fit(M, 128), _fit(N, 128), _fit(D, 256)
            need = (2 * ((tm_e + tn_e) * tk_e * in_bytes + (tm_e + tn_e) * 4
                         + tm_e * tn_e * out_bytes) + tm_e * tn_e * 4)
            choice = (tm_e, tn_e, tk_e, need)

    tm_e, tn_e, tk_e, need = choice
    # v7x megacore: keep >= 2 steps on a "parallel" grid axis so the second
    # TensorCore gets work (no effect on single-TC v5e/v6e).
    if B == 1 and -(-M // tm_e) == 1 and -(-N // tn_e) == 1 and M >= 16:
        tm_e = _round_up(-(-M // 2), 8)
    return tm_e, tn_e, tk_e, need


# ---------------------------------------------------------------------------
# Wrapper
# ---------------------------------------------------------------------------

def _cauchy_batched(x1, x2, inv_s, B, out_dtype, tile_override=None):
    """x1: (B1, M, D), x2: (B2, N, D) with B1, B2 in {1, B} -> (B, M, N)."""
    B1, M, D = x1.shape
    B2, N, _ = x2.shape
    in_bytes = jnp.dtype(x1.dtype).itemsize
    out_bytes = jnp.dtype(out_dtype).itemsize

    if tile_override is None:
        tm, tn, tk, need = _select_config(B, M, N, D, in_bytes, out_bytes)
    else:
        tm, tn, tk = tile_override
        tm, tn = _fit(M, tm), _fit(N, tn)
        tk = None if tk is None else _fit(D, tk)
        need = 2 * ((tm + tn) * (tk or D) * in_bytes + (tm + tn) * 4
                    + tm * tn * out_bytes)
        if tk is not None:
            need += tm * tn * 4

    # Scaled norm vectors, computed ONCE in the wrapper (f32):
    #   a2s = |x1_i|^2 / s           -> (B1, M, 1)
    #   b2s = 1 + |x2_j|^2 / s       -> (B2, 1, N)   (lane-dense row)
    inv_s = inv_s.astype(jnp.float32)
    x1f = x1.astype(jnp.float32)
    x2f = x2.astype(jnp.float32)
    a2s = inv_s * jnp.sum(x1f * x1f, axis=-1, keepdims=True)
    b2s = 1.0 + inv_s * jnp.sum(x2f * x2f, axis=-1)[:, None, :]
    c = jnp.reshape(-2.0 * inv_s, (1,)).astype(jnp.float32)   # scalar, lives in SMEM

    b1 = (lambda b: b) if B1 == B else (lambda b: 0)
    b2 = (lambda b: b) if B2 == B else (lambda b: 0)

    Mi, Nj = pl.cdiv(M, tm), pl.cdiv(N, tn)

    if tk is None:
        grid = (B, Mi, Nj)
        in_specs = [
            pl.BlockSpec(memory_space=pltpu.MemorySpace.SMEM),                # -2/s
            pl.BlockSpec((None, tm, D), lambda b, i, j: (b1(b), i, 0)),       # x1 tile
            pl.BlockSpec((None, tn, D), lambda b, i, j: (b2(b), j, 0)),       # x2 tile
            pl.BlockSpec((None, tm, 1), lambda b, i, j: (b1(b), i, 0)),       # |x1|^2/s
            pl.BlockSpec((None, 1, tn), lambda b, i, j: (b2(b), 0, j)),       # 1+|x2|^2/s
        ]
        out_spec = pl.BlockSpec((None, tm, tn), lambda b, i, j: (b, i, j))
        kernel = _cauchy_fulld_kernel
        scratch_shapes = []
        semantics = ("parallel", "parallel", "parallel")
    else:
        Dp = _round_up(D, tk)
        if Dp != D:
            # Zero-pad the contraction dim so out-of-bounds K blocks cannot
            # pollute the accumulator (zeros are a no-op for the Gram product).
            x1 = jnp.pad(x1, ((0, 0), (0, 0), (0, Dp - D)))
            x2 = jnp.pad(x2, ((0, 0), (0, 0), (0, Dp - D)))
        grid = (B, Mi, Nj, Dp // tk)
        in_specs = [
            pl.BlockSpec(memory_space=pltpu.MemorySpace.SMEM),
            pl.BlockSpec((None, tm, tk), lambda b, i, j, k: (b1(b), i, k)),
            pl.BlockSpec((None, tn, tk), lambda b, i, j, k: (b2(b), j, k)),
            pl.BlockSpec((None, tm, 1), lambda b, i, j, k: (b1(b), i, 0)),
            pl.BlockSpec((None, 1, tn), lambda b, i, j, k: (b2(b), 0, j)),
        ]
        out_spec = pl.BlockSpec((None, tm, tn), lambda b, i, j, k: (b, i, j))
        kernel = _cauchy_ktiled_kernel
        scratch_shapes = [pltpu.VMEM((tm, tn), jnp.float32)]
        semantics = ("parallel", "parallel", "parallel", "arbitrary")

    vmem_limit = min(max(32 * 1024 * 1024, int(need * 3 // 2)), 48 * 1024 * 1024)

    cost = pl.CostEstimate(
        flops=2 * B * M * N * D + 4 * B * M * N,
        transcendentals=B * M * N,                            # EUP approx reciprocal
        bytes_accessed=(B1 * M * D * in_bytes                 # x1, read once per (b, i)
                        + B * Mi * N * D * in_bytes           # x2, re-streamed per i-tile
                        + B1 * M * 4 + B * Mi * N * 4         # norm vectors (f32)
                        + B * M * N * out_bytes),             # output write
    )

    return pl.pallas_call(
        kernel,
        out_shape=jax.ShapeDtypeStruct((B, M, N), out_dtype),
        grid=grid,
        in_specs=in_specs,
        out_specs=out_spec,
        scratch_shapes=scratch_shapes,
        compiler_params=pltpu.CompilerParams(
            dimension_semantics=semantics,
            vmem_limit_bytes=vmem_limit),
        cost_estimate=cost,
    )(c, x1, x2, a2s, b2s)


def cauchy_kernel_forward(x1, x2, scale, *, tile_override=None):
    """JAX/Pallas equivalent of cauchy_kernel.forward.

    1 / (1 + dis2 / clamp(softplus(scale), 1e-10, 1e4)) with
    dis2 = |x1_i|^2 + |x2_j|^2 - 2 x1 @ x2.T.
    Uses an EUP approximate reciprocal (~1e-4 relative error) and clamps
    dis2 >= 0 to guard f32 cancellation.
    """
    # TODO(synk): torch keeps `scale` in float64; TPU has no native f64, so the
    # scalar softplus/clamp pipeline (and the kernel) run in float32.
    scale = jnp.asarray(scale, dtype=jnp.float32)
    s = jnp.clip(jax.nn.softplus(scale), 1e-10, 1e4).reshape(())
    inv_s = 1.0 / s

    if x1.dtype != x2.dtype:
        common = jnp.result_type(x1.dtype, x2.dtype)
        x1, x2 = x1.astype(common), x2.astype(common)
    out_dtype = x1.dtype

    M, D = x1.shape[-2:]
    N, D2 = x2.shape[-2:]
    assert D == D2, "feature dims of x1 and x2 must match"

    batch1, batch2 = x1.shape[:-2], x2.shape[:-2]
    batch = jnp.broadcast_shapes(batch1, batch2)
    B = int(math.prod(batch)) if batch else 1
    B1 = int(math.prod(batch1)) if batch1 else 1
    B2 = int(math.prod(batch2)) if batch2 else 1
    # torch.matmul-style batch broadcasting: shared-batch / unbatched operands
    # are handled natively (batch index map -> 0); anything else materializes.
    if B1 not in (1, B):
        x1 = jnp.broadcast_to(x1, batch + (M, D))
        B1 = B
    if B2 not in (1, B):
        x2 = jnp.broadcast_to(x2, batch + (N, D))
        B2 = B

    out = _cauchy_batched(x1.reshape(B1, M, D), x2.reshape(B2, N, D),
                          inv_s, B, out_dtype, tile_override=tile_override)
    return out.reshape(batch + (M, N))


# ---------------------------------------------------------------------------
# Self-test
# ---------------------------------------------------------------------------

if __name__ == "__main__":
    key = jax.random.PRNGKey(0)
    k1, k2, k3, k4, k5, k6 = jax.random.split(key, 6)

    def reference(x1, x2, scale):
        s = jnp.clip(jax.nn.softplus(jnp.asarray(scale, jnp.float32)), 1e-10, 1e4)
        x1sq = jnp.sum(x1 * x1, axis=-1, keepdims=True)
        x2sq = jnp.sum(x2 * x2, axis=-1, keepdims=True)
        prod = jnp.matmul(x1, jnp.swapaxes(x2, -2, -1))
        dis2 = x1sq + jnp.swapaxes(x2sq, -2, -1) - 2.0 * prod
        return 1.0 / (1.0 + dis2 / s)

    scale = jnp.array([0.5], dtype=jnp.float32)   # the nn.Parameter value
    RTOL, ATOL = 2e-3, 1e-3                       # covers the approx reciprocal

    # Test 1: 2-D, default tile selection (also exercises the grid>=2 split
    # and masked edge rows for M not a multiple of the chosen tile).
    M, N, D = 300, 280, 64
    x1 = jax.random.normal(k1, (M, D), dtype=jnp.float32)
    x2 = jax.random.normal(k2, (N, D), dtype=jnp.float32)
    y = jax.block_until_ready(cauchy_kernel_forward(x1, x2, scale))
    r = reference(x1, x2, scale)
    assert y.shape == (M, N) and y.dtype == x1.dtype
    assert jnp.allclose(y, r, rtol=RTOL, atol=ATOL), float(jnp.max(jnp.abs(y - r)))

    # Test 2: batched x1 + unbatched (broadcast) x2, small forced tiles so the
    # full-D kernel sees masked edge blocks along both M and N.
    B2_, M2, N2, D2 = 2, 200, 264, 48
    xb1 = jax.random.normal(k3, (B2_, M2, D2), dtype=jnp.float32)
    xb2 = jax.random.normal(k4, (N2, D2), dtype=jnp.float32)
    yb = jax.block_until_ready(
        cauchy_kernel_forward(xb1, xb2, scale, tile_override=(128, 128, None)))
    rb = reference(xb1, xb2, scale)
    assert yb.shape == (B2_, M2, N2)
    assert jnp.allclose(yb, rb, rtol=RTOL, atol=ATOL), float(jnp.max(jnp.abs(yb - rb)))

    # Test 3: K-tiled fallback path (large-D / v7x VMEM-budget branch) forced
    # at small shapes: batch axis, masked M/N edges, zero-padded contraction.
    B3, M3, N3, D3 = 2, 136, 160, 200
    xk1 = jax.random.normal(k5, (B3, M3, D3), dtype=jnp.float32)
    xk2 = jax.random.normal(k6, (B3, N3, D3), dtype=jnp.float32)
    yk = jax.block_until_ready(
        cauchy_kernel_forward(xk1, xk2, scale, tile_override=(128, 128, 128)))
    rk = reference(xk1, xk2, scale)
    assert yk.shape == (B3, M3, N3)
    assert jnp.allclose(yk, rk, rtol=RTOL, atol=ATOL), float(jnp.max(jnp.abs(yk - rk)))

    print("KERNEL_OK")
</pallas_src>

<mosaic_0001>
module attributes {stable_mosaic.version = 11 : i64} {
  func.func @_cauchy_fulld_kernel(%arg0: i32, %arg1: i32, %arg2: i32, %arg3: memref<1xf32, #tpu.memory_space<smem>>, %arg4: memref<1x152x64xf32, #tpu.memory_space<vmem>>, %arg5: memref<1x280x64xf32, #tpu.memory_space<vmem>>, %arg6: memref<1x152x1xf32, #tpu.memory_space<vmem>>, %arg7: memref<1x1x280xf32, #tpu.memory_space<vmem>>, %arg8: memref<1x152x280xf32, #tpu.memory_space<vmem>>) attributes {dimension_semantics = [#tpu.dimension_semantics<parallel>, #tpu.dimension_semantics<parallel>, #tpu.dimension_semantics<parallel>], iteration_bounds = array<i64: 1, 2, 1>, scalar_prefetch = 0 : i64, scratch_operands = 0 : i64, tpu.core_type = #tpu.core_type<tc>, window_params = [{transform_indices = @transform_0, window_bounds = array<i64: 1>}, {transform_indices = @transform_1, window_bounds = array<i64: 1, 152, 64>}, {transform_indices = @transform_2, window_bounds = array<i64: 1, 280, 64>}, {transform_indices = @transform_3, window_bounds = array<i64: 1, 152, 1>}, {transform_indices = @transform_4, window_bounds = array<i64: 1, 1, 280>}, {transform_indices = @transform_5, window_bounds = array<i64: 1, 152, 280>}]} {
    %c0 = arith.constant 0 : index
    %c0_0 = arith.constant 0 : index
    %c0_1 = arith.constant 0 : index
    %0 = vector.load %arg4[%c0, %c0_0, %c0_1] : memref<1x152x64xf32, #tpu.memory_space<vmem>>, vector<1x152x64xf32>
    %1 = vector.shape_cast %0 : vector<1x152x64xf32> to vector<152x64xf32>
    %c0_2 = arith.constant 0 : index
    %c0_3 = arith.constant 0 : index
    %c0_4 = arith.constant 0 : index
    %2 = vector.load %arg5[%c0_2, %c0_3, %c0_4] : memref<1x280x64xf32, #tpu.memory_space<vmem>>, vector<1x280x64xf32>
    %3 = vector.shape_cast %2 : vector<1x280x64xf32> to vector<280x64xf32>
    %cst = arith.constant dense<0.000000e+00> : vector<152x280xf32>
    %4 = tpu.matmul %1, %3, %cst {dimension_numbers = #tpu.dot_dimension_numbers<[1], [1], [0], [0], [0, 0, 1, 0], [], []>} : vector<152x64xf32>, vector<280x64xf32>, vector<152x280xf32> -> vector<152x280xf32>
    %c0_5 = arith.constant 0 : index
    %c0_6 = arith.constant 0 : index
    %c0_7 = arith.constant 0 : index
    %5 = vector.load %arg6[%c0_5, %c0_6, %c0_7] : memref<1x152x1xf32, #tpu.memory_space<vmem>>, vector<1x152x1xf32>
    %6 = vector.shape_cast %5 : vector<1x152x1xf32> to vector<152x1xf32>
    %c0_8 = arith.constant 0 : index
    %c0_9 = arith.constant 0 : index
    %c0_10 = arith.constant 0 : index
    %7 = vector.load %arg7[%c0_8, %c0_9, %c0_10] : memref<1x1x280xf32, #tpu.memory_space<vmem>>, vector<1x1x280xf32>
    %8 = vector.shape_cast %7 : vector<1x1x280xf32> to vector<1x280xf32>
    %9 = vector.broadcast %6 : vector<152x1xf32> to vector<152x280xf32>
    %10 = vector.broadcast %8 : vector<1x280xf32> to vector<152x280xf32>
    %11 = arith.addf %9, %10 : vector<152x280xf32>
    %c0_11 = arith.constant 0 : index
    %12 = memref.load %arg3[%c0_11] : memref<1xf32, #tpu.memory_space<smem>>
    %13 = vector.broadcast %12 : f32 to vector<152x280xf32>
    %14 = arith.mulf %13, %4 : vector<152x280xf32>
    %15 = arith.addf %11, %14 : vector<152x280xf32>
    %cst_12 = arith.constant 1.000000e+00 : f32
    %16 = vector.broadcast %cst_12 : f32 to vector<152x280xf32>
    %17 = arith.maximumf %15, %16 : vector<152x280xf32>
    %18 = tpu.reciprocal %17 {approx = true} : vector<152x280xf32> -> vector<152x280xf32>
    %c0_13 = arith.constant 0 : index
    %c0_14 = arith.constant 0 : index
    %c0_15 = arith.constant 0 : index
    %19 = vector.load %arg8[%c0_13, %c0_14, %c0_15] : memref<1x152x280xf32, #tpu.memory_space<vmem>>, vector<1x152x280xf32>
    %20 = vector.shape_cast %19 : vector<1x152x280xf32> to vector<152x280xf32>
    %21 = vector.shape_cast %18 : vector<152x280xf32> to vector<1x152x280xf32>
    tpu.vector_store %arg8[%c0_13, %c0_14, %c0_15], %21 {strides = array<i32>} : memref<1x152x280xf32, #tpu.memory_space<vmem>>, vector<1x152x280xf32>,
    return
  }
  func.func @transform_0(%arg0: i32, %arg1: i32, %arg2: i32) -> i32 {
    %c0_i32 = arith.constant 0 : i32
    %c0_i32_0 = arith.constant 0 : i32
    return %c0_i32 : i32
  }
  func.func @transform_1(%arg0: i32, %arg1: i32, %arg2: i32) -> (i32, i32, i32) {
    %c0_i32 = arith.constant 0 : i32
    %c0_i32_0 = arith.constant 0 : i32
    return %arg0, %arg1, %c0_i32 : i32, i32, i32
  }
  func.func @transform_2(%arg0: i32, %arg1: i32, %arg2: i32) -> (i32, i32, i32) {
    %c0_i32 = arith.constant 0 : i32
    %c0_i32_0 = arith.constant 0 : i32
    return %arg0, %arg2, %c0_i32 : i32, i32, i32
  }
  func.func @transform_3(%arg0: i32, %arg1: i32, %arg2: i32) -> (i32, i32, i32) {
    %c0_i32 = arith.constant 0 : i32
    %c0_i32_0 = arith.constant 0 : i32
    return %arg0, %arg1, %c0_i32 : i32, i32, i32
  }
  func.func @transform_4(%arg0: i32, %arg1: i32, %arg2: i32) -> (i32, i32, i32) {
    %c0_i32 = arith.constant 0 : i32
    %c0_i32_0 = arith.constant 0 : i32
    return %arg0, %c0_i32, %arg2 : i32, i32, i32
  }
  func.func @transform_5(%arg0: i32, %arg1: i32, %arg2: i32) -> (i32, i32, i32) {
    %c0_i32 = arith.constant 0 : i32
    return %arg0, %arg1, %arg2 : i32, i32, i32
  }
}

</mosaic_0001>

<llo_original>
// kernel: tpu_custom_call.1
$region0: #{tpu_custom_call.1}
  #allocation0 [shape = 'u32[]', space=smem, size = 0x4, offset = 0x4, fixed_abs, tag = 'smem constant byte address 0x4 - core index']
  #allocation1 [shape = 'u32[144,128]{1,0:T(1,128)}', space=vmem, size = 0x12000, scoped, tag = 'internal scratch']
  #allocation2 [shape = 'f32[1]{0:T(128)S(6)}', space=smem, size = 0x200, scoped, tag = 'scoped memory for tpu_custom_call.1']
  %s0 = inlined_call_operand.<no memory space> [shape: f32[1], index: 0, kind: input, shape index: {}]
  %s1 = inlined_call_operand.vmem [shape: f32[1,300,64], index: 1, kind: input, shape index: {}]
  %s2 = inlined_call_operand.vmem [shape: f32[1,280,64], index: 2, kind: input, shape index: {}]
  %s3 = inlined_call_operand.vmem [shape: f32[1,300,1], index: 3, kind: input, shape index: {}]
  %s4 = inlined_call_operand.vmem [shape: f32[1,1,280], index: 4, kind: input, shape index: {}]
  %s5 = inlined_call_operand.vmem [shape: f32[1,300,280], index: 5, kind: output, shape index: {}]
  %s6 = sld [smem:[#allocation0]]
  $region53: #{tpu_custom_call.1} parent=0
    _
  %s8 = ssub.s32 1, %s6
  %s9 = scalar_select 0, %s8, %s6
  %10 = sst [smem:[#allocation2]] %s0
  loop: start=0, step=1, limit=4
  $region2: #{tpu_custom_call.1} parent=0 // loop_pre_header
    _
  $region3: #{tpu_custom_call.1} parent=0 // loop_header
    %s12 = sphi 0, %s16
    %p13 = scmp.ge.s32.totalorder %s12, 4
    %s19 = sphi 0, %s38
    %s20 = sphi 0, %s34
    %s21 = sphi 0, %s30
    %s22 = sphi 0, %s19
    %s23 = sphi 0, %s20
    %s24 = sphi 0, %s21
    %s25 = sphi 0, %s22
    %s26 = sphi 0, %s23
    %s27 = sphi 0, %s24
    %s39 = sphi 0, %s39
    %s41 = sphi 0, %s39
    %s42 = sphi 0, %s41
    %s56 = sphi 0, %s42
    %s64 = sphi 0, %s66
    %s67 = sphi 0, %s64
    %s68 = sphi 0, %s67
    %s84 = sphi 0, %s68
    %s92 = sphi 0, %s94
    %s95 = sphi 0, %s92
    %s96 = sphi 0, %s95
    %s112 = sphi 0, %s96
    %s120 = sphi 0, %s122
    %s123 = sphi 0, %s120
    %s124 = sphi 0, %s123
    %s140 = sphi 0, %s124
    %s148 = sphi 0, %s150
    %s151 = sphi 0, %s148
    %s152 = sphi 0, %s151
    %s168 = sphi 0, %s152
    %s178 = sphi 0, %s180
    %s181 = sphi 0, %s178
    %s182 = sphi 0, %s181
    %s198 = sphi 0, %s182
  $region4: #{tpu_custom_call.1} parent=0 // loop_header_branch
    %15 = sbr.rel (%p13) target = $region8
  $region5: #{tpu_custom_call.1} parent=0 // loop_body
    %s17 = ssub.s32 %s12, 1
    %s18 = ssub.s32 %s12, 2
    %s28 = sadd.s32 1, %s21
    %p29 = scmp.ge.s32.totalorder %s28, 1
    %s30 = scalar_select %p29, 0, %s28
    %s31 = sadd.s32 1, %s20
    %s32 = scalar_select %p29, %s31, %s20
    %p33 = scmp.ge.s32.totalorder %s32, 2
    %s34 = scalar_select %p33, 0, %s32
    %s35 = sadd.s32 1, %s19
    %s36 = scalar_select %p33, %s35, %s19
    %p37 = scmp.ge.s32.totalorder %s36, 1
    %s38 = scalar_select %p37, 0, %s36
    %s40 = sadd.s32 %s39, 1
    %p43 = scmp.eq.s32.totalorder %s12, 1
    %p44 = scmp.ne.s32.totalorder %s39, %s41
    %p45 = scmp.eq.s32.totalorder %s12, 0
    %p46 = por %p44, %p45
    %p47 = scmp.ne.s32.totalorder %s39, %s41
    %p48 = scmp.eq.s32.totalorder %s17, 1
    %p49 = por %p47, %p48
    %p50 = scmp.ne.s32.totalorder %s41, %s42
    %p51 = scmp.eq.s32.totalorder %s17, 0
    %p52 = por %p50, %p51
    %p53 = scmp.ne.s32.totalorder %s41, %s42
    %p54 = scmp.eq.s32.totalorder %s18, 1
    %p55 = por %p53, %p54
    %p57 = scmp.ne.s32.totalorder %s42, %s56
    %p58 = scmp.eq.s32.totalorder %s18, 0
    %p59 = por %p57, %p58
    %s60 = ssub.s32 %s19, %s38
    %s61 = ssub.s32 %s20, %s34
    %s62 = sor.u32 %s60, %s61
    %p63 = scmp.eq.s32.totalorder %s62, 0
    %s65 = sadd.s32 %s64, 1
    %s66 = scalar_select %p63, %s64, %s65
    %p69 = pneg %p63
    %p70 = scmp.eq.s32.totalorder %s12, 1
    %p71 = por %p69, %p70
    %p72 = scmp.ne.s32.totalorder %s64, %s67
    %p73 = scmp.eq.s32.totalorder %s12, 0
    %p74 = por %p72, %p73
    %p75 = scmp.ne.s32.totalorder %s64, %s67
    %p76 = scmp.eq.s32.totalorder %s17, 1
    %p77 = por %p75, %p76
    %p78 = scmp.ne.s32.totalorder %s67, %s68
    %p79 = scmp.eq.s32.totalorder %s17, 0
    %p80 = por %p78, %p79
    %p81 = scmp.ne.s32.totalorder %s67, %s68
    %p82 = scmp.eq.s32.totalorder %s18, 1
    %p83 = por %p81, %p82
    %p85 = scmp.ne.s32.totalorder %s68, %s84
    %p86 = scmp.eq.s32.totalorder %s18, 0
    %p87 = por %p85, %p86
    %s88 = ssub.s32 %s19, %s38
    %s89 = ssub.s32 %s21, %s30
    %s90 = sor.u32 %s88, %s89
    %p91 = scmp.eq.s32.totalorder %s90, 0
    %s93 = sadd.s32 %s92, 1
    %s94 = scalar_select %p91, %s92, %s93
    %p97 = pneg %p91
    %p98 = scmp.eq.s32.totalorder %s12, 1
    %p99 = por %p97, %p98
    %p100 = scmp.ne.s32.totalorder %s92, %s95
    %p101 = scmp.eq.s32.totalorder %s12, 0
    %p102 = por %p100, %p101
    %p103 = scmp.ne.s32.totalorder %s92, %s95
    %p104 = scmp.eq.s32.totalorder %s17, 1
    %p105 = por %p103, %p104
    %p106 = scmp.ne.s32.totalorder %s95, %s96
    %p107 = scmp.eq.s32.totalorder %s17, 0
    %p108 = por %p106, %p107
    %p109 = scmp.ne.s32.totalorder %s95, %s96
    %p110 = scmp.eq.s32.totalorder %s18, 1
    %p111 = por %p109, %p110
    %p113 = scmp.ne.s32.totalorder %s96, %s112
    %p114 = scmp.eq.s32.totalorder %s18, 0
    %p115 = por %p113, %p114
    %s116 = ssub.s32 %s19, %s38
    %s117 = ssub.s32 %s20, %s34
    %s118 = sor.u32 %s116, %s117
    %p119 = scmp.eq.s32.totalorder %s118, 0
    %s121 = sadd.s32 %s120, 1
    %s122 = scalar_select %p119, %s120, %s121
    %p125 = pneg %p119
    %p126 = scmp.eq.s32.totalorder %s12, 1
    %p127 = por %p125, %p126
    %p128 = scmp.ne.s32.totalorder %s120, %s123
    %p129 = scmp.eq.s32.totalorder %s12, 0
    %p130 = por %p128, %p129
    %p131 = scmp.ne.s32.totalorder %s120, %s123
    %p132 = scmp.eq.s32.totalorder %s17, 1
    %p133 = por %p131, %p132
    %p134 = scmp.ne.s32.totalorder %s123, %s124
    %p135 = scmp.eq.s32.totalorder %s17, 0
    %p136 = por %p134, %p135
    %p137 = scmp.ne.s32.totalorder %s123, %s124
    %p138 = scmp.eq.s32.totalorder %s18, 1
    %p139 = por %p137, %p138
    %p141 = scmp.ne.s32.totalorder %s124, %s140
    %p142 = scmp.eq.s32.totalorder %s18, 0
    %p143 = por %p141, %p142
    %s144 = ssub.s32 %s19, %s38
    %s145 = ssub.s32 %s21, %s30
    %s146 = sor.u32 %s144, %s145
    %p147 = scmp.eq.s32.totalorder %s146, 0
    %s149 = sadd.s32 %s148, 1
    %s150 = scalar_select %p147, %s148, %s149
    %p153 = pneg %p147
    %p154 = scmp.eq.s32.totalorder %s12, 1
    %p155 = por %p153, %p154
    %p156 = scmp.ne.s32.totalorder %s148, %s151
    %p157 = scmp.eq.s32.totalorder %s12, 0
    %p158 = por %p156, %p157
    %p159 = scmp.ne.s32.totalorder %s148, %s151
    %p160 = scmp.eq.s32.totalorder %s17, 1
    %p161 = por %p159, %p160
    %p162 = scmp.ne.s32.totalorder %s151, %s152
    %p163 = scmp.eq.s32.totalorder %s17, 0
    %p164 = por %p162, %p163
    %p165 = scmp.ne.s32.totalorder %s151, %s152
    %p166 = scmp.eq.s32.totalorder %s18, 1
    %p167 = por %p165, %p166
    %p169 = scmp.ne.s32.totalorder %s152, %s168
    %p170 = scmp.eq.s32.totalorder %s18, 0
    %p171 = por %p169, %p170
    %s172 = ssub.s32 %s19, %s38
    %s173 = ssub.s32 %s20, %s34
    %s174 = sor.u32 %s172, %s173
    %s175 = ssub.s32 %s21, %s30
    %s176 = sor.u32 %s174, %s175
    %p177 = scmp.eq.s32.totalorder %s176, 0
    %s179 = sadd.s32 %s178, 1
    %s180 = scalar_select %p177, %s178, %s179
    %p183 = pneg %p177
    %p184 = scmp.eq.s32.totalorder %s12, 1
    %p185 = por %p183, %p184
    %p186 = scmp.ne.s32.totalorder %s178, %s181
    %p187 = scmp.eq.s32.totalorder %s12, 0
    %p188 = por %p186, %p187
    %p189 = scmp.ne.s32.totalorder %s178, %s181
    %p190 = scmp.eq.s32.totalorder %s17, 1
    %p191 = por %p189, %p190
    %p192 = scmp.ne.s32.totalorder %s181, %s182
    %p193 = scmp.eq.s32.totalorder %s17, 0
    %p194 = por %p192, %p193
    %p195 = scmp.ne.s32.totalorder %s181, %s182
    %p196 = scmp.eq.s32.totalorder %s18, 1
    %p197 = por %p195, %p196
    %p199 = scmp.ne.s32.totalorder %s182, %s198
    %p200 = scmp.eq.s32.totalorder %s18, 0
    %p201 = por %p199, %p200
    %p202 = scmp.le.s32.totalorder 1, %s12
    %p203 = scmp.lt.s32.totalorder %s12, 3
    %p204 = pnand %p202, %p203
    %p205 = pneg %p204
    // Predicated region
    $region9: #{tpu_custom_call.1} parent=5 // pred_check
      _
    $region10: #{tpu_custom_call.1} parent=5 // pred_check_branch
      %207 = sbr.rel (%p204) target = $region12
    $region11: #{tpu_custom_call.1} parent=5 // pred_region
      %s208 = ssub.s32 %s12, 1
      // Predicated region
      $region13: #{tpu_custom_call.1} parent=11 // pred_check
        %p209 = pneg %p52
      $region14: #{tpu_custom_call.1} parent=11 // pred_check_branch
        %211 = sbr.rel (%p209) target = $region16
      $region15: #{tpu_custom_call.1} parent=11 // pred_region
        _
      $region16: #{tpu_custom_call.1} parent=11 // pred_fallthru
        _
      // Predicated region
      $region17: #{tpu_custom_call.1} parent=11 // pred_check
        %p212 = pneg %p108
      $region18: #{tpu_custom_call.1} parent=11 // pred_check_branch
        %214 = sbr.rel (%p212) target = $region20
      $region19: #{tpu_custom_call.1} parent=11 // pred_region
        %s215 = smul.u32 35, %s24
        %p216 = scmp.lt.s32.totalorder %s22, 0
        %s217 = scalar_select %p216, %s22, 0
        %p218 = scmp.lt.s32.totalorder %s215, 34
        %s219 = scalar_select %p218, %s215, 34
        %s220 = smul.addr %s217, 35
        %s221 = sadd.s32 %s219, %s220
        %s222 = smul.addr %s221, 8
        %s223 = scalar_lea.vmem %s2, %s222
        %s224 = smul.u32 35, %s24
      $region20: #{tpu_custom_call.1} parent=11 // pred_fallthru
        _
      // Predicated region
      $region21: #{tpu_custom_call.1} parent=11 // pred_check
        %p225 = pneg %p164
      $region22: #{tpu_custom_call.1} parent=11 // pred_check_branch
        %227 = sbr.rel (%p225) target = $region24
      $region23: #{tpu_custom_call.1} parent=11 // pred_region
        %s228 = smul.u32 3, %s24
        %p229 = scmp.lt.s32.totalorder %s22, 0
        %s230 = scalar_select %p229, %s22, 0
        %p231 = scmp.lt.s32.totalorder %s228, 2
        %s232 = scalar_select %p231, %s228, 2
        %s233 = smul.addr %s230, 3
        %s234 = sadd.s32 %s232, %s233
        %s235 = scalar_lea.vmem %s4, %s234
        %s236 = smul.u32 3, %s24
      $region24: #{tpu_custom_call.1} parent=11 // pred_fallthru
        _
    $region12: #{tpu_custom_call.1} parent=5 // pred_fallthru
      _
    %p237 = scmp.lt.s32.totalorder %s12, 2
    // Predicated region
    $region25: #{tpu_custom_call.1} parent=5 // pred_check
      %p238 = pneg %p237
    $region26: #{tpu_custom_call.1} parent=5 // pred_check_branch
      %240 = sbr.rel (%p238) target = $region28
    $region27: #{tpu_custom_call.1} parent=5 // pred_region
      // Predicated region
      $region29: #{tpu_custom_call.1} parent=27 // pred_check
        %p241 = pneg %p74
      $region30: #{tpu_custom_call.1} parent=27 // pred_check_branch
        %243 = sbr.rel (%p241) target = $region32
      $region31: #{tpu_custom_call.1} parent=27 // pred_region
        %s244 = smul.u32 19, %s20
        %p245 = scmp.lt.s32.totalorder %s19, 0
        %s246 = scalar_select %p245, %s19, 0
        %p247 = scmp.lt.s32.totalorder %s244, 37
        %s248 = scalar_select %p247, %s244, 37
        %s249 = smul.addr %s246, 38
        %s250 = sadd.s32 %s248, %s249
        %s251 = smul.addr %s250, 8
        %s252 = scalar_lea.vmem %s1, %s251
        %s253 = smul.u32 19, %s20
      $region32: #{tpu_custom_call.1} parent=27 // pred_fallthru
        _
      // Predicated region
      $region33: #{tpu_custom_call.1} parent=27 // pred_check
        %p254 = pneg %p130
      $region34: #{tpu_custom_call.1} parent=27 // pred_check_branch
        %256 = sbr.rel (%p254) target = $region36
      $region35: #{tpu_custom_call.1} parent=27 // pred_region
        %s257 = smul.u32 19, %s20
        %p258 = scmp.lt.s32.totalorder %s19, 0
        %s259 = scalar_select %p258, %s19, 0
        %p260 = scmp.lt.s32.totalorder %s257, 37
        %s261 = scalar_select %p260, %s257, 37
        %s262 = smul.addr %s259, 38
        %s263 = sadd.s32 %s261, %s262
        %s264 = smul.addr %s263, 8
        %s265 = scalar_lea.vmem %s3, %s264
        %s266 = smul.u32 19, %s20
      $region36: #{tpu_custom_call.1} parent=27 // pred_fallthru
        _
    $region28: #{tpu_custom_call.1} parent=5 // pred_fallthru
      _
    %p267 = scmp.le.s32.totalorder 1, %s12
    %p268 = scmp.lt.s32.totalorder %s12, 3
    %p269 = pnand %p267, %p268
    %p270 = pneg %p269
    // Predicated region
    $region37: #{tpu_custom_call.1} parent=5 // pred_check
      _
    $region38: #{tpu_custom_call.1} parent=5 // pred_check_branch
      %272 = sbr.rel (%p269) target = $region40
    $region39: #{tpu_custom_call.1} parent=5 // pred_region
      %s273 = ssub.s32 %s12, 1
      %p274 = pneg %p52
      %p275 = pneg %p49
      %s276 = smul.u32 19, %s23
      %p277 = scmp.lt.s32.totalorder %s22, 0
      %s278 = scalar_select %p277, %s22, 0
      %p279 = scmp.lt.s32.totalorder %s276, 37
      %s280 = scalar_select %p279, %s276, 37
      %s281 = smul.addr %s278, 38
      %s282 = sadd.s32 %s280, %s281
      %s283 = smul.addr %s282, 8
      %s284 = scalar_lea.vmem %s1, %s283
      %p285 = pneg %p80
      %p286 = pneg %p77
      %s287 = smul.u32 35, %s24
      %p288 = scmp.lt.s32.totalorder %s22, 0
      %s289 = scalar_select %p288, %s22, 0
      %p290 = scmp.lt.s32.totalorder %s287, 34
      %s291 = scalar_select %p290, %s287, 34
      %s292 = smul.addr %s289, 35
      %s293 = sadd.s32 %s291, %s292
      %s294 = smul.addr %s293, 8
      %s295 = scalar_lea.vmem %s2, %s294
      %p296 = pneg %p108
      %p297 = pneg %p105
      %s298 = smul.u32 19, %s23
      %p299 = scmp.lt.s32.totalorder %s22, 0
      %s300 = scalar_select %p299, %s22, 0
      %p301 = scmp.lt.s32.totalorder %s298, 37
      %s302 = scalar_select %p301, %s298, 37
      %s303 = smul.addr %s300, 38
      %s304 = sadd.s32 %s302, %s303
      %s305 = smul.addr %s304, 8
      %s306 = scalar_lea.vmem %s3, %s305
      %p307 = pneg %p136
      %p308 = pneg %p133
      %s309 = smul.u32 3, %s24
      %p310 = scmp.lt.s32.totalorder %s22, 0
      %s311 = scalar_select %p310, %s22, 0
      %p312 = scmp.lt.s32.totalorder %s309, 2
      %s313 = scalar_select %p312, %s309, 2
      %s314 = smul.addr %s311, 3
      %s315 = sadd.s32 %s313, %s314
      %s316 = scalar_lea.vmem %s4, %s315
      %p317 = pneg %p164
      %p318 = pneg %p161
      %p319 = pneg %p194
      %p320 = pneg %p191
      %s321 = smul.u32 19, %s23
      %s322 = smul.u32 3, %s24
      %p323 = scmp.lt.s32.totalorder %s22, 0
      %s324 = scalar_select %p323, %s22, 0
      %p325 = scmp.lt.s32.totalorder %s321, 37
      %s326 = scalar_select %p325, %s321, 37
      %p327 = scmp.lt.s32.totalorder %s322, 2
      %s328 = scalar_select %p327, %s322, 2
      %s329 = smul.addr %s326, 3
      %s330 = sadd.s32 %s328, %s329
      %s331 = smul.addr %s324, 114
      %s332 = sadd.s32 %s330, %s331
      %s333 = smul.addr %s332, 8
      %s334 = scalar_lea.vmem %s5, %s333
      %s335 = smul.u32 19, %s23
      %p336 = scmp.lt.s32.totalorder %s22, 0
      %s337 = scalar_select %p336, %s22, 0
      %p338 = scmp.lt.s32.totalorder %s335, 37
      %s339 = scalar_select %p338, %s335, 37
      %s340 = smul.addr %s337, 38
      %s341 = sadd.s32 %s339, %s340
      %s342 = smul.addr %s341, 8
      %s343 = scalar_lea.vmem %s1, %s342
      %s344 = smul.u32 19, %s23
      %s345 = smul.u32 35, %s24
      %p346 = scmp.lt.s32.totalorder %s22, 0
      %s347 = scalar_select %p346, %s22, 0
      %p348 = scmp.lt.s32.totalorder %s345, 34
      %s349 = scalar_select %p348, %s345, 34
      %s350 = smul.addr %s347, 35
      %s351 = sadd.s32 %s349, %s350
      %s352 = smul.addr %s351, 8
      %s353 = scalar_lea.vmem %s2, %s352
      %s354 = smul.u32 35, %s24
      %s355 = smul.u32 19, %s23
      %p356 = scmp.lt.s32.totalorder %s22, 0
      %s357 = scalar_select %p356, %s22, 0
      %p358 = scmp.lt.s32.totalorder %s355, 37
      %s359 = scalar_select %p358, %s355, 37
      %s360 = smul.addr %s357, 38
      %s361 = sadd.s32 %s359, %s360
      %s362 = smul.addr %s361, 8
      %s363 = scalar_lea.vmem %s3, %s362
      %s364 = smul.u32 19, %s23
      %s365 = smul.u32 3, %s24
      %p366 = scmp.lt.s32.totalorder %s22, 0
      %s367 = scalar_select %p366, %s22, 0
      %p368 = scmp.lt.s32.totalorder %s365, 2
      %s369 = scalar_select %p368, %s365, 2
      %s370 = smul.addr %s367, 3
      %s371 = sadd.s32 %s369, %s370
      %s372 = scalar_lea.vmem %s4, %s371
      %s373 = smul.u32 3, %s24
      %s374 = smul.u32 19, %s23
      %s375 = smul.u32 3, %s24
      %p376 = scmp.lt.s32.totalorder %s22, 0
      %s377 = scalar_select %p376, %s22, 0
      %p378 = scmp.lt.s32.totalorder %s374, 37
      %s379 = scalar_select %p378, %s374, 37
      %p380 = scmp.lt.s32.totalorder %s375, 2
      %s381 = scalar_select %p380, %s375, 2
      %s382 = smul.addr %s379, 3
      %s383 = sadd.s32 %s381, %s382
      %s384 = smul.addr %s377, 114
      %s385 = sadd.s32 %s383, %s384
      %s386 = smul.addr %s385, 8
      %s387 = scalar_lea.vmem %s5, %s386
      %s388 = smul.u32 19, %s23
      %s389 = smul.u32 3, %s24
      %v390 = vld [vmem:[%s343] sm:$0xff]
      %v391 = vld [vmem:[%s343 + $0x8] sm:$0xff]
      %v392 = vld [vmem:[%s343 + $0x10] sm:$0xff]
      %v393 = vld [vmem:[%s343 + $0x18] sm:$0xff]
      %v394 = vld [vmem:[%s343 + $0x20] sm:$0xff]
      %v395 = vld [vmem:[%s343 + $0x28] sm:$0xff]
      %v396 = vld [vmem:[%s343 + $0x30] sm:$0xff]
      %v397 = vld [vmem:[%s343 + $0x38] sm:$0xff]
      %v398 = vld [vmem:[%s343 + $0x40] sm:$0xff]
      %v399 = vld [vmem:[%s343 + $0x48] sm:$0xff]
      %v400 = vld [vmem:[%s343 + $0x50] sm:$0xff]
      %v401 = vld [vmem:[%s343 + $0x58] sm:$0xff]
      %v402 = vld [vmem:[%s343 + $0x60] sm:$0xff]
      %v403 = vld [vmem:[%s343 + $0x68] sm:$0xff]
      %v404 = vld [vmem:[%s343 + $0x70] sm:$0xff]
      %v405 = vld [vmem:[%s343 + $0x78] sm:$0xff]
      %v406 = vld [vmem:[%s343 + $0x80] sm:$0xff]
      %v407 = vld [vmem:[%s343 + $0x88] sm:$0xff]
      %v408 = vld [vmem:[%s343 + $0x90] sm:$0xff]
      %v409 = vld [vmem:[%s353] sm:$0xff]
      %v410 = vld [vmem:[%s353 + $0x8] sm:$0xff]
      %v411 = vld [vmem:[%s353 + $0x10] sm:$0xff]
      %v412 = vld [vmem:[%s353 + $0x18] sm:$0xff]
      %v413 = vld [vmem:[%s353 + $0x20] sm:$0xff]
      %v414 = vld [vmem:[%s353 + $0x28] sm:$0xff]
      %v415 = vld [vmem:[%s353 + $0x30] sm:$0xff]
      %v416 = vld [vmem:[%s353 + $0x38] sm:$0xff]
      %v417 = vld [vmem:[%s353 + $0x40] sm:$0xff]
      %v418 = vld [vmem:[%s353 + $0x48] sm:$0xff]
      %v419 = vld [vmem:[%s353 + $0x50] sm:$0xff]
      %v420 = vld [vmem:[%s353 + $0x58] sm:$0xff]
      %v421 = vld [vmem:[%s353 + $0x60] sm:$0xff]
      %v422 = vld [vmem:[%s353 + $0x68] sm:$0xff]
      %v423 = vld [vmem:[%s353 + $0x70] sm:$0xff]
      %v424 = vld [vmem:[%s353 + $0x78] sm:$0xff]
      %v425 = vld [vmem:[%s353 + $0x80] sm:$0xff]
      %v426 = vld [vmem:[%s353 + $0x88] sm:$0xff]
      %v427 = vld [vmem:[%s353 + $0x90] sm:$0xff]
      %v428 = vld [vmem:[%s353 + $0x98] sm:$0xff]
      %v429 = vld [vmem:[%s353 + $0xa0] sm:$0xff]
      %v430 = vld [vmem:[%s353 + $0xa8] sm:$0xff]
      %v431 = vld [vmem:[%s353 + $0xb0] sm:$0xff]
      %v432 = vld [vmem:[%s353 + $0xb8] sm:$0xff]
      %v433 = vld [vmem:[%s353 + $0xc0] sm:$0xff]
      %v434 = vld [vmem:[%s353 + $0xc8] sm:$0xff]
      %v435 = vld [vmem:[%s353 + $0xd0] sm:$0xff]
      %v436 = vld [vmem:[%s353 + $0xd8] sm:$0xff]
      %v437 = vld [vmem:[%s353 + $0xe0] sm:$0xff]
      %v438 = vld [vmem:[%s353 + $0xe8] sm:$0xff]
      %v439 = vld [vmem:[%s353 + $0xf0] sm:$0xff]
      %v440 = vld [vmem:[%s353 + $0xf8] sm:$0xff]
      %v441 = vld [vmem:[%s353 + $0x100] sm:$0xff]
      %v442 = vld [vmem:[%s353 + $0x108] sm:$0xff]
      %v443 = vld [vmem:[%s353 + $0x110] sm:$0xff]
      %vm444 = vcmask 523264
      %v446 = vsel %vm444, %v390, 0
      %v449 = vsel %vm444, %v391, 0
      %v452 = vsel %vm444, %v392, 0
      %v455 = vsel %vm444, %v393, 0
      %v458 = vsel %vm444, %v394, 0
      %v461 = vsel %vm444, %v395, 0
      %v464 = vsel %vm444, %v396, 0
      %v467 = vsel %vm444, %v397, 0
      %v470 = vsel %vm444, %v398, 0
      %v473 = vsel %vm444, %v399, 0
      %v476 = vsel %vm444, %v400, 0
      %v479 = vsel %vm444, %v401, 0
      %v482 = vsel %vm444, %v402, 0
      %v485 = vsel %vm444, %v403, 0
      %v488 = vsel %vm444, %v404, 0
      %v491 = vsel %vm444, %v405, 0
      %v494 = vsel %vm444, %v406, 0
      %v497 = vsel %vm444, %v407, 0
      %v500 = vsel %vm444, %v408, 0
      %v503 = vsel %vm444, %v409, 0
      %v506 = vsel %vm444, %v410, 0
      %v509 = vsel %vm444, %v411, 0
      %v512 = vsel %vm444, %v412, 0
      %v515 = vsel %vm444, %v413, 0
      %v518 = vsel %vm444, %v414, 0
      %v521 = vsel %vm444, %v415, 0
      %v524 = vsel %vm444, %v416, 0
      %v527 = vsel %vm444, %v417, 0
      %v530 = vsel %vm444, %v418, 0
      %v533 = vsel %vm444, %v419, 0
      %v536 = vsel %vm444, %v420, 0
      %v539 = vsel %vm444, %v421, 0
      %v542 = vsel %vm444, %v422, 0
      %v545 = vsel %vm444, %v423, 0
      %v548 = vsel %vm444, %v424, 0
      %v551 = vsel %vm444, %v425, 0
      %v554 = vsel %vm444, %v426, 0
      %v557 = vsel %vm444, %v427, 0
      %v560 = vsel %vm444, %v428, 0
      %v563 = vsel %vm444, %v429, 0
      %v566 = vsel %vm444, %v430, 0
      %v569 = vsel %vm444, %v431, 0
      %v572 = vsel %vm444, %v432, 0
      %v575 = vsel %vm444, %v433, 0
      %v578 = vsel %vm444, %v434, 0
      %v581 = vsel %vm444, %v435, 0
      %v584 = vsel %vm444, %v436, 0
      %v587 = vsel %vm444, %v437, 0
      %v590 = vsel %vm444, %v438, 0
      %v593 = vsel %vm444, %v439, 0
      %v596 = vsel %vm444, %v440, 0
      %v599 = vsel %vm444, %v441, 0
      %v602 = vsel %vm444, %v442, 0
      %v605 = vsel %vm444, %v443, 0
      %607 = vmatprep.subr.mxu0 0.0
      %608 = vmatpush1.xpose.msra.mxu0 %v503
      %609 = vmatprep.subr.mxu0 0.0
      %610 = vmatpush1.xpose.msra.mxu0 %v506
      %611 = vmatprep.subr.mxu0 0.0
      %612 = vmatpush1.xpose.msra.mxu0 %v509
      %613 = vmatprep.subr.mxu0 0.0
      %614 = vmatpush1.xpose.msra.mxu0 %v512
      %615 = vmatprep.subr.mxu0 0.0
      %616 = vmatpush1.xpose.msra.mxu0 %v515
      %617 = vmatprep.subr.mxu0 0.0
      %618 = vmatpush1.xpose.msra.mxu0 %v518
      %619 = vmatprep.subr.mxu0 0.0
      %620 = vmatpush1.xpose.msra.mxu0 %v521
      %621 = vmatprep.subr.mxu0 0.0
      %622 = vmatpush1.xpose.msra.mxu0 %v524
      %623 = vmatprep.subr.mxu0 0.0
      %624 = vmatpush1.xpose.msra.mxu0 %v527
      %625 = vmatprep.subr.mxu0 0.0
      %626 = vmatpush1.xpose.msra.mxu0 %v530
      %627 = vmatprep.subr.mxu0 0.0
      %628 = vmatpush1.xpose.msra.mxu0 %v533
      %629 = vmatprep.subr.mxu0 0.0
      %630 = vmatpush1.xpose.msra.mxu0 %v536
      %631 = vmatprep.subr.mxu0 0.0
      %632 = vmatpush1.xpose.msra.mxu0 %v539
      %633 = vmatprep.subr.mxu0 0.0
      %634 = vmatpush1.xpose.msra.mxu0 %v542
      %635 = vmatprep.subr.mxu0 0.0
      %636 = vmatpush1.xpose.msra.mxu0 %v545
      %637 = vmatprep.subr.mxu0 0.0
      %638 = vmatpush1.xpose.msra.mxu0 %v548
      %639 = vmatprep.subr.mxu0 0.0
      %640 = vmatpush1.xpose.msra.mxu0 %v551
      %641 = vmatprep.subr.mxu0 0.0
      %642 = vmatpush1.xpose.msra.mxu0 %v554
      %643 = vmatprep.subr.mxu0 0.0
      %644 = vmatpush1.xpose.msra.mxu0 %v557
      %645 = vmatprep.subr.mxu0 0.0
      %646 = vmatpush1.xpose.msra.mxu0 %v560
      %647 = vmatprep.subr.mxu0 0.0
      %648 = vmatpush1.xpose.msra.mxu0 %v563
      %649 = vmatprep.subr.mxu0 0.0
      %650 = vmatpush1.xpose.msra.mxu0 %v566
      %651 = vmatprep.subr.mxu0 0.0
      %652 = vmatpush1.xpose.msra.mxu0 %v569
      %653 = vmatprep.subr.mxu0 0.0
      %654 = vmatpush1.xpose.msra.mxu0 %v572
      %655 = vmatprep.subr.mxu0 0.0
      %656 = vmatpush1.xpose.msra.mxu0 %v575
      %657 = vmatprep.subr.mxu0 0.0
      %658 = vmatpush1.xpose.msra.mxu0 %v578
      %659 = vmatprep.subr.mxu0 0.0
      %660 = vmatpush1.xpose.msra.mxu0 %v581
      %661 = vmatprep.subr.mxu0 0.0
      %662 = vmatpush1.xpose.msra.mxu0 %v584
      %663 = vmatprep.subr.mxu0 0.0
      %664 = vmatpush1.xpose.msra.mxu0 %v587
      %665 = vmatprep.subr.mxu0 0.0
      %666 = vmatpush1.xpose.msra.mxu0 %v590
      %667 = vmatprep.subr.mxu0 0.0
      %668 = vmatpush1.xpose.msra.mxu0 %v593
      %669 = vmatprep.subr.mxu0 0.0
      %670 = vmatpush1.xpose.msra.mxu0 %v596
      %671 = vmatprep.mubr.f32.mxu0 0.0
      %672 = vmatmul.mubr.f32.gmra.mrb[0].mxu0 %v446
      %v673 = vpop.f32.mrb[0].mxu0
      %v674 = vadd.f32 0.0, %v673
      %v675 = vpop.f32.mrb[0].mxu0
      %v676 = vadd.f32 0.0, %v675
      %677 = vmatprep.mubr.f32.mxu0 0.0
      %678 = vmatmul.mubr.f32.gmra.mrb[0].mxu0 %v449
      %v679 = vpop.f32.mrb[0].mxu0
      %v680 = vadd.f32 0.0, %v679
      %v681 = vpop.f32.mrb[0].mxu0
      %v682 = vadd.f32 0.0, %v681
      %683 = vmatprep.mubr.f32.mxu0 0.0
      %684 = vmatmul.mubr.f32.gmra.mrb[0].mxu0 %v452
      %v685 = vpop.f32.mrb[0].mxu0
      %v686 = vadd.f32 0.0, %v685
      %v687 = vpop.f32.mrb[0].mxu0
      %v688 = vadd.f32 0.0, %v687
      %689 = vmatprep.mubr.f32.mxu0 0.0
      %690 = vmatmul.mubr.f32.gmra.mrb[0].mxu0 %v455
      %v691 = vpop.f32.mrb[0].mxu0
      %v692 = vadd.f32 0.0, %v691
      %v693 = vpop.f32.mrb[0].mxu0
      %v694 = vadd.f32 0.0, %v693
      %695 = vmatprep.mubr.f32.mxu0 0.0
      %696 = vmatmul.mubr.f32.gmra.mrb[0].mxu0 %v458
      %v697 = vpop.f32.mrb[0].mxu0
      %v698 = vadd.f32 0.0, %v697
      %v699 = vpop.f32.mrb[0].mxu0
      %v700 = vadd.f32 0.0, %v699
      %701 = vmatprep.mubr.f32.mxu0 0.0
      %702 = vmatmul.mubr.f32.gmra.mrb[0].mxu0 %v461
      %v703 = vpop.f32.mrb[0].mxu0
      %v704 = vadd.f32 0.0, %v703
      %v705 = vpop.f32.mrb[0].mxu0
      %v706 = vadd.f32 0.0, %v705
      %707 = vmatprep.mubr.f32.mxu0 0.0
      %708 = vmatmul.mubr.f32.gmra.mrb[0].mxu0 %v464
      %v709 = vpop.f32.mrb[0].mxu0
      %v710 = vadd.f32 0.0, %v709
      %v711 = vpop.f32.mrb[0].mxu0
      %v712 = vadd.f32 0.0, %v711
      %713 = vmatprep.mubr.f32.mxu0 0.0
      %714 = vmatmul.mubr.f32.gmra.mrb[0].mxu0 %v467
      %v715 = vpop.f32.mrb[0].mxu0
      %v716 = vadd.f32 0.0, %v715
      %v717 = vpop.f32.mrb[0].mxu0
      %v718 = vadd.f32 0.0, %v717
      %719 = vmatprep.mubr.f32.mxu0 0.0
      %720 = vmatmul.mubr.f32.gmra.mrb[0].mxu0 %v470
      %v721 = vpop.f32.mrb[0].mxu0
      %v722 = vadd.f32 0.0, %v721
      %v723 = vpop.f32.mrb[0].mxu0
      %v724 = vadd.f32 0.0, %v723
      %725 = vmatprep.mubr.f32.mxu0 0.0
      %726 = vmatmul.mubr.f32.gmra.mrb[0].mxu0 %v473
      %v727 = vpop.f32.mrb[0].mxu0
      %v728 = vadd.f32 0.0, %v727
      %v729 = vpop.f32.mrb[0].mxu0
      %v730 = vadd.f32 0.0, %v729
      %731 = vmatprep.mubr.f32.mxu0 0.0
      %732 = vmatmul.mubr.f32.gmra.mrb[0].mxu0 %v476
      %v733 = vpop.f32.mrb[0].mxu0
      %v734 = vadd.f32 0.0, %v733
      %v735 = vpop.f32.mrb[0].mxu0
      %v736 = vadd.f32 0.0, %v735
      %737 = vmatprep.mubr.f32.mxu0 0.0
      %738 = vmatmul.mubr.f32.gmra.mrb[0].mxu0 %v479
      %v739 = vpop.f32.mrb[0].mxu0
      %v740 = vadd.f32 0.0, %v739
      %v741 = vpop.f32.mrb[0].mxu0
      %v742 = vadd.f32 0.0, %v741
      %743 = vmatprep.mubr.f32.mxu0 0.0
      %744 = vmatmul.mubr.f32.gmra.mrb[0].mxu0 %v482
      %v745 = vpop.f32.mrb[0].mxu0
      %v746 = vadd.f32 0.0, %v745
      %v747 = vpop.f32.mrb[0].mxu0
      %v748 = vadd.f32 0.0, %v747
      %749 = vmatprep.mubr.f32.mxu0 0.0
      %750 = vmatmul.mubr.f32.gmra.mrb[0].mxu0 %v485
      %v751 = vpop.f32.mrb[0].mxu0
      %v752 = vadd.f32 0.0, %v751
      %v753 = vpop.f32.mrb[0].mxu0
      %v754 = vadd.f32 0.0, %v753
      %755 = vmatprep.mubr.f32.mxu0 0.0
      %756 = vmatmul.mubr.f32.gmra.mrb[0].mxu0 %v488
      %v757 = vpop.f32.mrb[0].mxu0
      %v758 = vadd.f32 0.0, %v757
      %v759 = vpop.f32.mrb[0].mxu0
      %v760 = vadd.f32 0.0, %v759
      %761 = vmatprep.mubr.f32.mxu0 0.0
      %762 = vmatmul.mubr.f32.gmra.mrb[0].mxu0 %v491
      %v763 = vpop.f32.mrb[0].mxu0
      %v764 = vadd.f32 0.0, %v763
      %v765 = vpop.f32.mrb[0].mxu0
      %v766 = vadd.f32 0.0, %v765
      %767 = vmatprep.mubr.f32.mxu0 0.0
      %768 = vmatmul.mubr.f32.gmra.mrb[0].mxu0 %v494
      %v769 = vpop.f32.mrb[0].mxu0
      %v770 = vadd.f32 0.0, %v769
      %v771 = vpop.f32.mrb[0].mxu0
      %v772 = vadd.f32 0.0, %v771
      %773 = vmatprep.mubr.f32.mxu0 0.0
      %774 = vmatmul.mubr.f32.gmra.mrb[0].mxu0 %v497
      %v775 = vpop.f32.mrb[0].mxu0
      %v776 = vadd.f32 0.0, %v775
      %v777 = vpop.f32.mrb[0].mxu0
      %v778 = vadd.f32 0.0, %v777
      %779 = vmatprep.mubr.f32.mxu0 0.0
      %780 = vmatmul.mubr.f32.gmra.mrb[0].mxu0 %v500
      %v781 = vpop.f32.mrb[0].mxu0
      %v782 = vadd.f32 0.0, %v781
      %v783 = vpop.f32.mrb[0].mxu0
      %v784 = vadd.f32 0.0, %v783
      %785 = vdwg.mxu0
      %786 = vmatprep.subr.mxu0 0.0
      %787 = vmatpush1.xpose.msra.mxu0 %v599
      %788 = vmatprep.subr.mxu0 0.0
      %789 = vmatpush1.xpose.msra.mxu0 %v602
      %790 = vmatprep.subr.mxu0 0.0
      %791 = vmatpush1.xpose.msra.mxu0 %v605
      %792 = vmatprep.subr.mxu0 0.0
      %793 = vmatpush1.xpose.msra.mxu0 0.0
      %794 = vmatprep.subr.mxu0 0.0
      %795 = vmatpush1.xpose.msra.mxu0 0.0
      %796 = vmatprep.subr.mxu0 0.0
      %797 = vmatpush1.xpose.msra.mxu0 0.0
      %798 = vmatprep.subr.mxu0 0.0
      %799 = vmatpush1.xpose.msra.mxu0 0.0
      %800 = vmatprep.subr.mxu0 0.0
      %801 = vmatpush1.xpose.msra.mxu0 0.0
      %802 = vmatprep.subr.mxu0 0.0
      %803 = vmatpush1.xpose.msra.mxu0 0.0
      %804 = vmatprep.subr.mxu0 0.0
      %805 = vmatpush1.xpose.msra.mxu0 0.0
      %806 = vmatprep.subr.mxu0 0.0
      %807 = vmatpush1.xpose.msra.mxu0 0.0
      %808 = vmatprep.subr.mxu0 0.0
      %809 = vmatpush1.xpose.msra.mxu0 0.0
      %810 = vmatprep.subr.mxu0 0.0
      %811 = vmatpush1.xpose.msra.mxu0 0.0
      %812 = vmatprep.subr.mxu0 0.0
      %813 = vmatpush1.xpose.msra.mxu0 0.0
      %814 = vmatprep.subr.mxu0 0.0
      %815 = vmatpush1.xpose.msra.mxu0 0.0
      %816 = vmatprep.subr.mxu0 0.0
      %817 = vmatpush1.xpose.msra.mxu0 0.0
      %818 = vmatprep.subr.mxu0 0.0
      %819 = vmatpush1.xpose.msra.mxu0 0.0
      %820 = vmatprep.subr.mxu0 0.0
      %821 = vmatpush1.xpose.msra.mxu0 0.0
      %822 = vmatprep.subr.mxu0 0.0
      %823 = vmatpush1.xpose.msra.mxu0 0.0
      %824 = vmatprep.subr.mxu0 0.0
      %825 = vmatpush1.xpose.msra.mxu0 0.0
      %826 = vmatprep.subr.mxu0 0.0
      %827 = vmatpush1.xpose.msra.mxu0 0.0
      %828 = vmatprep.subr.mxu0 0.0
      %829 = vmatpush1.xpose.msra.mxu0 0.0
      %830 = vmatprep.subr.mxu0 0.0
      %831 = vmatpush1.xpose.msra.mxu0 0.0
      %832 = vmatprep.subr.mxu0 0.0
      %833 = vmatpush1.xpose.msra.mxu0 0.0
      %834 = vmatprep.subr.mxu0 0.0
      %835 = vmatpush1.xpose.msra.mxu0 0.0
      %836 = vmatprep.subr.mxu0 0.0
      %837 = vmatpush1.xpose.msra.mxu0 0.0
      %838 = vmatprep.subr.mxu0 0.0
      %839 = vmatpush1.xpose.msra.mxu0 0.0
      %840 = vmatprep.subr.mxu0 0.0
      %841 = vmatpush1.xpose.msra.mxu0 0.0
      %842 = vmatprep.subr.mxu0 0.0
      %843 = vmatpush1.xpose.msra.mxu0 0.0
      %844 = vmatprep.subr.mxu0 0.0
      %845 = vmatpush1.xpose.msra.mxu0 0.0
      %846 = vmatprep.subr.mxu0 0.0
      %847 = vmatpush1.xpose.msra.mxu0 0.0
      %848 = vmatprep.subr.mxu0 0.0
      %849 = vmatpush1.xpose.msra.mxu0 0.0
      %850 = vmatprep.mubr.f32.mxu0 0.0
      %851 = vmatmul.mubr.f32.gmra.mrb[0].mxu0 %v446
      %v852 = vpop.f32.mrb[0].mxu0
      %v853 = vadd.f32 0.0, %v852
      %v854 = vpop.f32.mrb[0].mxu0
      %855 = vmatprep.mubr.f32.mxu0 0.0
      %856 = vmatmul.mubr.f32.gmra.mrb[0].mxu0 %v449
      %v857 = vpop.f32.mrb[0].mxu0
      %v858 = vadd.f32 0.0, %v857
      %v859 = vpop.f32.mrb[0].mxu0
      %860 = vmatprep.mubr.f32.mxu0 0.0
      %861 = vmatmul.mubr.f32.gmra.mrb[0].mxu0 %v452
      %v862 = vpop.f32.mrb[0].mxu0
      %v863 = vadd.f32 0.0, %v862
      %v864 = vpop.f32.mrb[0].mxu0
      %865 = vmatprep.mubr.f32.mxu0 0.0
      %866 = vmatmul.mubr.f32.gmra.mrb[0].mxu0 %v455
      %v867 = vpop.f32.mrb[0].mxu0
      %v868 = vadd.f32 0.0, %v867
      %v869 = vpop.f32.mrb[0].mxu0
      %870 = vmatprep.mubr.f32.mxu0 0.0
      %871 = vmatmul.mubr.f32.gmra.mrb[0].mxu0 %v458
      %v872 = vpop.f32.mrb[0].mxu0
      %v873 = vadd.f32 0.0, %v872
      %v874 = vpop.f32.mrb[0].mxu0
      %875 = vmatprep.mubr.f32.mxu0 0.0
      %876 = vmatmul.mubr.f32.gmra.mrb[0].mxu0 %v461
      %v877 = vpop.f32.mrb[0].mxu0
      %v878 = vadd.f32 0.0, %v877
      %v879 = vpop.f32.mrb[0].mxu0
      %880 = vmatprep.mubr.f32.mxu0 0.0
      %881 = vmatmul.mubr.f32.gmra.mrb[0].mxu0 %v464
      %v882 = vpop.f32.mrb[0].mxu0
      %v883 = vadd.f32 0.0, %v882
      %v884 = vpop.f32.mrb[0].mxu0
      %885 = vmatprep.mubr.f32.mxu0 0.0
      %886 = vmatmul.mubr.f32.gmra.mrb[0].mxu0 %v467
      %v887 = vpop.f32.mrb[0].mxu0
      %v888 = vadd.f32 0.0, %v887
      %v889 = vpop.f32.mrb[0].mxu0
      %890 = vmatprep.mubr.f32.mxu0 0.0
      %891 = vmatmul.mubr.f32.gmra.mrb[0].mxu0 %v470
      %v892 = vpop.f32.mrb[0].mxu0
      %v893 = vadd.f32 0.0, %v892
      %v894 = vpop.f32.mrb[0].mxu0
      %895 = vmatprep.mubr.f32.mxu0 0.0
      %896 = vmatmul.mubr.f32.gmra.mrb[0].mxu0 %v473
      %v897 = vpop.f32.mrb[0].mxu0
      %v898 = vadd.f32 0.0, %v897
      %v899 = vpop.f32.mrb[0].mxu0
      %900 = vmatprep.mubr.f32.mxu0 0.0
      %901 = vmatmul.mubr.f32.gmra.mrb[0].mxu0 %v476
      %v902 = vpop.f32.mrb[0].mxu0
      %v903 = vadd.f32 0.0, %v902
      %v904 = vpop.f32.mrb[0].mxu0
      %905 = vmatprep.mubr.f32.mxu0 0.0
      %906 = vmatmul.mubr.f32.gmra.mrb[0].mxu0 %v479
      %v907 = vpop.f32.mrb[0].mxu0
      %v908 = vadd.f32 0.0, %v907
      %v909 = vpop.f32.mrb[0].mxu0
      %910 = vmatprep.mubr.f32.mxu0 0.0
      %911 = vmatmul.mubr.f32.gmra.mrb[0].mxu0 %v482
      %v912 = vpop.f32.mrb[0].mxu0
      %v913 = vadd.f32 0.0, %v912
      %v914 = vpop.f32.mrb[0].mxu0
      %915 = vmatprep.mubr.f32.mxu0 0.0
      %916 = vmatmul.mubr.f32.gmra.mrb[0].mxu0 %v485
      %v917 = vpop.f32.mrb[0].mxu0
      %v918 = vadd.f32 0.0, %v917
      %v919 = vpop.f32.mrb[0].mxu0
      %920 = vmatprep.mubr.f32.mxu0 0.0
      %921 = vmatmul.mubr.f32.gmra.mrb[0].mxu0 %v488
      %v922 = vpop.f32.mrb[0].mxu0
      %v923 = vadd.f32 0.0, %v922
      %v924 = vpop.f32.mrb[0].mxu0
      %925 = vmatprep.mubr.f32.mxu0 0.0
      %926 = vmatmul.mubr.f32.gmra.mrb[0].mxu0 %v491
      %v927 = vpop.f32.mrb[0].mxu0
      %v928 = vadd.f32 0.0, %v927
      %v929 = vpop.f32.mrb[0].mxu0
      %930 = vmatprep.mubr.f32.mxu0 0.0
      %931 = vmatmul.mubr.f32.gmra.mrb[0].mxu0 %v494
      %v932 = vpop.f32.mrb[0].mxu0
      %v933 = vadd.f32 0.0, %v932
      %v934 = vpop.f32.mrb[0].mxu0
      %935 = vmatprep.mubr.f32.mxu0 0.0
      %936 = vmatmul.mubr.f32.gmra.mrb[0].mxu0 %v497
      %v937 = vpop.f32.mrb[0].mxu0
      %v938 = vadd.f32 0.0, %v937
      %v939 = vpop.f32.mrb[0].mxu0
      %940 = vmatprep.mubr.f32.mxu0 0.0
      %941 = vmatmul.mubr.f32.gmra.mrb[0].mxu0 %v500
      %v942 = vpop.f32.mrb[0].mxu0
      %v943 = vadd.f32 0.0, %v942
      %v944 = vpop.f32.mrb[0].mxu0
      %945 = vdwg.mxu0
      %v946 = vld [vmem:[%s363] sm:$0xff]
      %v947 = vld [vmem:[%s363 + $0x8] sm:$0xff]
      %v948 = vld [vmem:[%s363 + $0x10] sm:$0xff]
      %v949 = vld [vmem:[%s363 + $0x18] sm:$0xff]
      %v950 = vld [vmem:[%s363 + $0x20] sm:$0xff]
      %v951 = vld [vmem:[%s363 + $0x28] sm:$0xff]
      %v952 = vld [vmem:[%s363 + $0x30] sm:$0xff]
      %v953 = vld [vmem:[%s363 + $0x38] sm:$0xff]
      %v954 = vld [vmem:[%s363 + $0x40] sm:$0xff]
      %v955 = vld [vmem:[%s363 + $0x48] sm:$0xff]
      %v956 = vld [vmem:[%s363 + $0x50] sm:$0xff]
      %v957 = vld [vmem:[%s363 + $0x58] sm:$0xff]
      %v958 = vld [vmem:[%s363 + $0x60] sm:$0xff]
      %v959 = vld [vmem:[%s363 + $0x68] sm:$0xff]
      %v960 = vld [vmem:[%s363 + $0x70] sm:$0xff]
      %v961 = vld [vmem:[%s363 + $0x78] sm:$0xff]
      %v962 = vld [vmem:[%s363 + $0x80] sm:$0xff]
      %v963 = vld [vmem:[%s363 + $0x88] sm:$0xff]
      %v964 = vld [vmem:[%s363 + $0x90] sm:$0xff]
      %v965 = vld [vmem:[%s372] sm:$0x7]
      %967 = vset.pattern.permute.xlu0 0
      %968 = vperm.xlu0 %967, %v946
      %v969 = vpop.permute.xlu0 %968
      %972 = vset.pattern.permute.xlu0 0
      %973 = vperm.xlu0 %972, %v947
      %v974 = vpop.permute.xlu0 %973
      %977 = vset.pattern.permute.xlu0 0
      %978 = vperm.xlu0 %977, %v948
      %v979 = vpop.permute.xlu0 %978
      %982 = vset.pattern.permute.xlu0 0
      %983 = vperm.xlu0 %982, %v949
      %v984 = vpop.permute.xlu0 %983
      %987 = vset.pattern.permute.xlu0 0
      %988 = vperm.xlu0 %987, %v950
      %v989 = vpop.permute.xlu0 %988
      %992 = vset.pattern.permute.xlu0 0
      %993 = vperm.xlu0 %992, %v951
      %v994 = vpop.permute.xlu0 %993
      %997 = vset.pattern.permute.xlu0 0
      %998 = vperm.xlu0 %997, %v952
      %v999 = vpop.permute.xlu0 %998
      %1002 = vset.pattern.permute.xlu0 0
      %1003 = vperm.xlu0 %1002, %v953
      %v1004 = vpop.permute.xlu0 %1003
      %1007 = vset.pattern.permute.xlu0 0
      %1008 = vperm.xlu0 %1007, %v954
      %v1009 = vpop.permute.xlu0 %1008
      %1012 = vset.pattern.permute.xlu0 0
      %1013 = vperm.xlu0 %1012, %v955
      %v1014 = vpop.permute.xlu0 %1013
      %1017 = vset.pattern.permute.xlu0 0
      %1018 = vperm.xlu0 %1017, %v956
      %v1019 = vpop.permute.xlu0 %1018
      %1022 = vset.pattern.permute.xlu0 0
      %1023 = vperm.xlu0 %1022, %v957
      %v1024 = vpop.permute.xlu0 %1023
      %1027 = vset.pattern.permute.xlu0 0
      %1028 = vperm.xlu0 %1027, %v958
      %v1029 = vpop.permute.xlu0 %1028
      %1032 = vset.pattern.permute.xlu0 0
      %1033 = vperm.xlu0 %1032, %v959
      %v1034 = vpop.permute.xlu0 %1033
      %1037 = vset.pattern.permute.xlu0 0
      %1038 = vperm.xlu0 %1037, %v960
      %v1039 = vpop.permute.xlu0 %1038
      %1042 = vset.pattern.permute.xlu0 0
      %1043 = vperm.xlu0 %1042, %v961
      %v1044 = vpop.permute.xlu0 %1043
      %1047 = vset.pattern.permute.xlu0 0
      %1048 = vperm.xlu0 %1047, %v962
      %v1049 = vpop.permute.xlu0 %1048
      %1052 = vset.pattern.permute.xlu0 0
      %1053 = vperm.xlu0 %1052, %v963
      %v1054 = vpop.permute.xlu0 %1053
      %1057 = vset.pattern.permute.xlu0 0
      %1058 = vperm.xlu0 %1057, %v964
      %v1059 = vpop.permute.xlu0 %1058
      %v1062 = vlaneseq
      %v1063 = vshrl.u32 %v1062, 7
      %v1064 = vsub.s32 0, %v1063
      %v1065 = vrot.slane %v965, %v1064
      %v1066 = vlaneseq
      %v1067 = vshrl.u32 %v1066, 7
      %v1068 = vsub.s32 1, %v1067
      %v1069 = vrot.slane %v965, %v1068
      %v1070 = vlaneseq
      %v1071 = vshrl.u32 %v1070, 7
      %v1072 = vsub.s32 2, %v1071
      %v1073 = vrot.slane %v965, %v1072
      %v1077 = vadd.f32 %v969, %v1065
      %v1078 = vadd.f32 %v969, %v1069
      %v1079 = vadd.f32 %v969, %v1073
      %v1080 = vadd.f32 %v974, %v1065
      %v1081 = vadd.f32 %v974, %v1069
      %v1082 = vadd.f32 %v974, %v1073
      %v1083 = vadd.f32 %v979, %v1065
      %v1084 = vadd.f32 %v979, %v1069
      %v1085 = vadd.f32 %v979, %v1073
      %v1086 = vadd.f32 %v984, %v1065
      %v1087 = vadd.f32 %v984, %v1069
      %v1088 = vadd.f32 %v984, %v1073
      %v1089 = vadd.f32 %v989, %v1065
      %v1090 = vadd.f32 %v989, %v1069
      %v1091 = vadd.f32 %v989, %v1073
      %v1092 = vadd.f32 %v994, %v1065
      %v1093 = vadd.f32 %v994, %v1069
      %v1094 = vadd.f32 %v994, %v1073
      %v1095 = vadd.f32 %v999, %v1065
      %v1096 = vadd.f32 %v999, %v1069
      %v1097 = vadd.f32 %v999, %v1073
      %v1098 = vadd.f32 %v1004, %v1065
      %v1099 = vadd.f32 %v1004, %v1069
      %v1100 = vadd.f32 %v1004, %v1073
      %v1101 = vadd.f32 %v1009, %v1065
      %v1102 = vadd.f32 %v1009, %v1069
      %v1103 = vadd.f32 %v1009, %v1073
      %v1104 = vadd.f32 %v1014, %v1065
      %v1105 = vadd.f32 %v1014, %v1069
      %v1106 = vadd.f32 %v1014, %v1073
      %v1107 = vadd.f32 %v1019, %v1065
      %v1108 = vadd.f32 %v1019, %v1069
      %v1109 = vadd.f32 %v1019, %v1073
      %v1110 = vadd.f32 %v1024, %v1065
      %v1111 = vadd.f32 %v1024, %v1069
      %v1112 = vadd.f32 %v1024, %v1073
      %v1113 = vadd.f32 %v1029, %v1065
      %v1114 = vadd.f32 %v1029, %v1069
      %v1115 = vadd.f32 %v1029, %v1073
      %v1116 = vadd.f32 %v1034, %v1065
      %v1117 = vadd.f32 %v1034, %v1069
      %v1118 = vadd.f32 %v1034, %v1073
      %v1119 = vadd.f32 %v1039, %v1065
      %v1120 = vadd.f32 %v1039, %v1069
      %v1121 = vadd.f32 %v1039, %v1073
      %v1122 = vadd.f32 %v1044, %v1065
      %v1123 = vadd.f32 %v1044, %v1069
      %v1124 = vadd.f32 %v1044, %v1073
      %v1125 = vadd.f32 %v1049, %v1065
      %v1126 = vadd.f32 %v1049, %v1069
      %v1127 = vadd.f32 %v1049, %v1073
      %v1128 = vadd.f32 %v1054, %v1065
      %v1129 = vadd.f32 %v1054, %v1069
      %v1130 = vadd.f32 %v1054, %v1073
      %v1131 = vadd.f32 %v1059, %v1065
      %v1132 = vadd.f32 %v1059, %v1069
      %v1133 = vadd.f32 %v1059, %v1073
      %s1134 = sld [smem:[#allocation2]]
      %v1135 = vstv %s1134
      %v1136 = vmul.f32 %v1135, %v674
      %v1137 = vmul.f32 %v1135, %v676
      %v1138 = vmul.f32 %v1135, %v853
      %v1139 = vmul.f32 %v1135, %v680
      %v1140 = vmul.f32 %v1135, %v682
      %v1141 = vmul.f32 %v1135, %v858
      %v1142 = vmul.f32 %v1135, %v686
      %v1143 = vmul.f32 %v1135, %v688
      %v1144 = vmul.f32 %v1135, %v863
      %v1145 = vmul.f32 %v1135, %v692
      %v1146 = vmul.f32 %v1135, %v694
      %v1147 = vmul.f32 %v1135, %v868
      %v1148 = vmul.f32 %v1135, %v698
      %v1149 = vmul.f32 %v1135, %v700
      %v1150 = vmul.f32 %v1135, %v873
      %v1151 = vmul.f32 %v1135, %v704
      %v1152 = vmul.f32 %v1135, %v706
      %v1153 = vmul.f32 %v1135, %v878
      %v1154 = vmul.f32 %v1135, %v710
      %v1155 = vmul.f32 %v1135, %v712
      %v1156 = vmul.f32 %v1135, %v883
      %v1157 = vmul.f32 %v1135, %v716
      %v1158 = vmul.f32 %v1135, %v718
      %v1159 = vmul.f32 %v1135, %v888
      %v1160 = vmul.f32 %v1135, %v722
      %v1161 = vmul.f32 %v1135, %v724
      %v1162 = vmul.f32 %v1135, %v893
      %v1163 = vmul.f32 %v1135, %v728
      %v1164 = vmul.f32 %v1135, %v730
      %v1165 = vmul.f32 %v1135, %v898
      %v1166 = vmul.f32 %v1135, %v734
      %v1167 = vmul.f32 %v1135, %v736
      %v1168 = vmul.f32 %v1135, %v903
      %v1169 = vmul.f32 %v1135, %v740
      %v1170 = vmul.f32 %v1135, %v742
      %v1171 = vmul.f32 %v1135, %v908
      %v1172 = vmul.f32 %v1135, %v746
      %v1173 = vmul.f32 %v1135, %v748
      %v1174 = vmul.f32 %v1135, %v913
      %v1175 = vmul.f32 %v1135, %v752
      %v1176 = vmul.f32 %v1135, %v754
      %v1177 = vmul.f32 %v1135, %v918
      %v1178 = vmul.f32 %v1135, %v758
      %v1179 = vmul.f32 %v1135, %v760
      %v1180 = vmul.f32 %v1135, %v923
      %v1181 = vmul.f32 %v1135, %v764
      %v1182 = vmul.f32 %v1135, %v766
      %v1183 = vmul.f32 %v1135, %v928
      %v1184 = vmul.f32 %v1135, %v770
      %v1185 = vmul.f32 %v1135, %v772
      %v1186 = vmul.f32 %v1135, %v933
      %v1187 = vmul.f32 %v1135, %v776
      %v1188 = vmul.f32 %v1135, %v778
      %v1189 = vmul.f32 %v1135, %v938
      %v1190 = vmul.f32 %v1135, %v782
      %v1191 = vmul.f32 %v1135, %v784
      %v1192 = vmul.f32 %v1135, %v943
      %v1193 = vadd.f32 %v1077, %v1136
      %v1194 = vadd.f32 %v1078, %v1137
      %v1195 = vadd.f32 %v1079, %v1138
      %v1196 = vadd.f32 %v1080, %v1139
      %v1197 = vadd.f32 %v1081, %v1140
      %v1198 = vadd.f32 %v1082, %v1141
      %v1199 = vadd.f32 %v1083, %v1142
      %v1200 = vadd.f32 %v1084, %v1143
      %v1201 = vadd.f32 %v1085, %v1144
      %v1202 = vadd.f32 %v1086, %v1145
      %v1203 = vadd.f32 %v1087, %v1146
      %v1204 = vadd.f32 %v1088, %v1147
      %v1205 = vadd.f32 %v1089, %v1148
      %v1206 = vadd.f32 %v1090, %v1149
      %v1207 = vadd.f32 %v1091, %v1150
      %v1208 = vadd.f32 %v1092, %v1151
      %v1209 = vadd.f32 %v1093, %v1152
      %v1210 = vadd.f32 %v1094, %v1153
      %v1211 = vadd.f32 %v1095, %v1154
      %v1212 = vadd.f32 %v1096, %v1155
      %v1213 = vadd.f32 %v1097, %v1156
      %v1214 = vadd.f32 %v1098, %v1157
      %v1215 = vadd.f32 %v1099, %v1158
      %v1216 = vadd.f32 %v1100, %v1159
      %v1217 = vadd.f32 %v1101, %v1160
      %v1218 = vadd.f32 %v1102, %v1161
      %v1219 = vadd.f32 %v1103, %v1162
      %v1220 = vadd.f32 %v1104, %v1163
      %v1221 = vadd.f32 %v1105, %v1164
      %v1222 = vadd.f32 %v1106, %v1165
      %v1223 = vadd.f32 %v1107, %v1166
      %v1224 = vadd.f32 %v1108, %v1167
      %v1225 = vadd.f32 %v1109, %v1168
      %v1226 = vadd.f32 %v1110, %v1169
      %v1227 = vadd.f32 %v1111, %v1170
      %v1228 = vadd.f32 %v1112, %v1171
      %v1229 = vadd.f32 %v1113, %v1172
      %v1230 = vadd.f32 %v1114, %v1173
      %v1231 = vadd.f32 %v1115, %v1174
      %v1232 = vadd.f32 %v1116, %v1175
      %v1233 = vadd.f32 %v1117, %v1176
      %v1234 = vadd.f32 %v1118, %v1177
      %v1235 = vadd.f32 %v1119, %v1178
      %v1236 = vadd.f32 %v1120, %v1179
      %v1237 = vadd.f32 %v1121, %v1180
      %v1238 = vadd.f32 %v1122, %v1181
      %v1239 = vadd.f32 %v1123, %v1182
      %v1240 = vadd.f32 %v1124, %v1183
      %v1241 = vadd.f32 %v1125, %v1184
      %v1242 = vadd.f32 %v1126, %v1185
      %v1243 = vadd.f32 %v1127, %v1186
      %v1244 = vadd.f32 %v1128, %v1187
      %v1245 = vadd.f32 %v1129, %v1188
      %v1246 = vadd.f32 %v1130, %v1189
      %v1247 = vadd.f32 %v1131, %v1190
      %v1248 = vadd.f32 %v1132, %v1191
      %v1249 = vadd.f32 %v1133, %v1192
      %v1250 = vmax.f32 %v1193, 1.0
      %v1251 = vmax.f32 %v1194, 1.0
      %v1252 = vmax.f32 %v1195, 1.0
      %v1253 = vmax.f32 %v1196, 1.0
      %v1254 = vmax.f32 %v1197, 1.0
      %v1255 = vmax.f32 %v1198, 1.0
      %v1256 = vmax.f32 %v1199, 1.0
      %v1257 = vmax.f32 %v1200, 1.0
      %v1258 = vmax.f32 %v1201, 1.0
      %v1259 = vmax.f32 %v1202, 1.0
      %v1260 = vmax.f32 %v1203, 1.0
      %v1261 = vmax.f32 %v1204, 1.0
      %v1262 = vmax.f32 %v1205, 1.0
      %v1263 = vmax.f32 %v1206, 1.0
      %v1264 = vmax.f32 %v1207, 1.0
      %v1265 = vmax.f32 %v1208, 1.0
      %v1266 = vmax.f32 %v1209, 1.0
      %v1267 = vmax.f32 %v1210, 1.0
      %v1268 = vmax.f32 %v1211, 1.0
      %v1269 = vmax.f32 %v1212, 1.0
      %v1270 = vmax.f32 %v1213, 1.0
      %v1271 = vmax.f32 %v1214, 1.0
      %v1272 = vmax.f32 %v1215, 1.0
      %v1273 = vmax.f32 %v1216, 1.0
      %v1274 = vmax.f32 %v1217, 1.0
      %v1275 = vmax.f32 %v1218, 1.0
      %v1276 = vmax.f32 %v1219, 1.0
      %v1277 = vmax.f32 %v1220, 1.0
      %v1278 = vmax.f32 %v1221, 1.0
      %v1279 = vmax.f32 %v1222, 1.0
      %v1280 = vmax.f32 %v1223, 1.0
      %v1281 = vmax.f32 %v1224, 1.0
      %v1282 = vmax.f32 %v1225, 1.0
      %v1283 = vmax.f32 %v1226, 1.0
      %v1284 = vmax.f32 %v1227, 1.0
      %v1285 = vmax.f32 %v1228, 1.0
      %v1286 = vmax.f32 %v1229, 1.0
      %v1287 = vmax.f32 %v1230, 1.0
      %v1288 = vmax.f32 %v1231, 1.0
      %v1289 = vmax.f32 %v1232, 1.0
      %v1290 = vmax.f32 %v1233, 1.0
      %v1291 = vmax.f32 %v1234, 1.0
      %v1292 = vmax.f32 %v1235, 1.0
      %v1293 = vmax.f32 %v1236, 1.0
      %v1294 = vmax.f32 %v1237, 1.0
      %v1295 = vmax.f32 %v1238, 1.0
      %v1296 = vmax.f32 %v1239, 1.0
      %v1297 = vmax.f32 %v1240, 1.0
      %v1298 = vmax.f32 %v1241, 1.0
      %v1299 = vmax.f32 %v1242, 1.0
      %v1300 = vmax.f32 %v1243, 1.0
      %v1301 = vmax.f32 %v1244, 1.0
      %v1302 = vmax.f32 %v1245, 1.0
      %v1303 = vmax.f32 %v1246, 1.0
      %v1304 = vmax.f32 %v1247, 1.0
      %v1305 = vmax.f32 %v1248, 1.0
      %v1306 = vmax.f32 %v1249, 1.0
      %v1307 = vrcp.pop %v1250
      %v1308 = vrcp.pop %v1251
      %v1309 = vrcp.pop %v1252
      %v1310 = vrcp.pop %v1253
      %v1311 = vrcp.pop %v1254
      %v1312 = vrcp.pop %v1255
      %v1313 = vrcp.pop %v1256
      %v1314 = vrcp.pop %v1257
      %v1315 = vrcp.pop %v1258
      %v1316 = vrcp.pop %v1259
      %v1317 = vrcp.pop %v1260
      %v1318 = vrcp.pop %v1261
      %v1319 = vrcp.pop %v1262
      %v1320 = vrcp.pop %v1263
      %v1321 = vrcp.pop %v1264
      %v1322 = vrcp.pop %v1265
      %v1323 = vrcp.pop %v1266
      %v1324 = vrcp.pop %v1267
      %v1325 = vrcp.pop %v1268
      %v1326 = vrcp.pop %v1269
      %v1327 = vrcp.pop %v1270
      %v1328 = vrcp.pop %v1271
      %v1329 = vrcp.pop %v1272
      %v1330 = vrcp.pop %v1273
      %v1331 = vrcp.pop %v1274
      %v1332 = vrcp.pop %v1275
      %v1333 = vrcp.pop %v1276
      %v1334 = vrcp.pop %v1277
      %v1335 = vrcp.pop %v1278
      %v1336 = vrcp.pop %v1279
      %v1337 = vrcp.pop %v1280
      %v1338 = vrcp.pop %v1281
      %v1339 = vrcp.pop %v1282
      %v1340 = vrcp.pop %v1283
      %v1341 = vrcp.pop %v1284
      %v1342 = vrcp.pop %v1285
      %v1343 = vrcp.pop %v1286
      %v1344 = vrcp.pop %v1287
      %v1345 = vrcp.pop %v1288
      %v1346 = vrcp.pop %v1289
      %v1347 = vrcp.pop %v1290
      %v1348 = vrcp.pop %v1291
      %v1349 = vrcp.pop %v1292
      %v1350 = vrcp.pop %v1293
      %v1351 = vrcp.pop %v1294
      %v1352 = vrcp.pop %v1295
      %v1353 = vrcp.pop %v1296
      %v1354 = vrcp.pop %v1297
      %v1355 = vrcp.pop %v1298
      %v1356 = vrcp.pop %v1299
      %v1357 = vrcp.pop %v1300
      %v1358 = vrcp.pop %v1301
      %v1359 = vrcp.pop %v1302
      %v1360 = vrcp.pop %v1303
      %v1361 = vrcp.pop %v1304
      %v1362 = vrcp.pop %v1305
      %v1363 = vrcp.pop %v1306
      %1364 = vst [vmem:[%s387] sm:$0xff] %v1307
      %1365 = vst [vmem:[%s387 + $0x8] sm:$0xff] %v1308
      %vm1366 = vcmask 195584
      %1367 = vst.msk [vmem:[%s387 + $0x10] sm:$0xff] %vm1366, %v1309
      %1368 = vst [vmem:[%s387 + $0x18] sm:$0xff] %v1310
      %1369 = vst [vmem:[%s387 + $0x20] sm:$0xff] %v1311
      %1370 = vst.msk [vmem:[%s387 + $0x28] sm:$0xff] %vm1366, %v1312
      %1371 = vst [vmem:[%s387 + $0x30] sm:$0xff] %v1313
      %1372 = vst [vmem:[%s387 + $0x38] sm:$0xff] %v1314
      %1373 = vst.msk [vmem:[%s387 + $0x40] sm:$0xff] %vm1366, %v1315
      %1374 = vst [vmem:[%s387 + $0x48] sm:$0xff] %v1316
      %1375 = vst [vmem:[%s387 + $0x50] sm:$0xff] %v1317
      %1376 = vst.msk [vmem:[%s387 + $0x58] sm:$0xff] %vm1366, %v1318
      %1377 = vst [vmem:[%s387 + $0x60] sm:$0xff] %v1319
      %1378 = vst [vmem:[%s387 + $0x68] sm:$0xff] %v1320
      %1379 = vst.msk [vmem:[%s387 + $0x70] sm:$0xff] %vm1366, %v1321
      %1380 = vst [vmem:[%s387 + $0x78] sm:$0xff] %v1322
      %1381 = vst [vmem:[%s387 + $0x80] sm:$0xff] %v1323
      %1382 = vst.msk [vmem:[%s387 + $0x88] sm:$0xff] %vm1366, %v1324
      %1383 = vst [vmem:[%s387 + $0x90] sm:$0xff] %v1325
      %1384 = vst [vmem:[%s387 + $0x98] sm:$0xff] %v1326
      %1385 = vst.msk [vmem:[%s387 + $0xa0] sm:$0xff] %vm1366, %v1327
      %1386 = vst [vmem:[%s387 + $0xa8] sm:$0xff] %v1328
      %1387 = vst [vmem:[%s387 + $0xb0] sm:$0xff] %v1329
      %1388 = vst.msk [vmem:[%s387 + $0xb8] sm:$0xff] %vm1366, %v1330
      %1389 = vst [vmem:[%s387 + $0xc0] sm:$0xff] %v1331
      %1390 = vst [vmem:[%s387 + $0xc8] sm:$0xff] %v1332
      %1391 = vst.msk [vmem:[%s387 + $0xd0] sm:$0xff] %vm1366, %v1333
      %1392 = vst [vmem:[%s387 + $0xd8] sm:$0xff] %v1334
      %1393 = vst [vmem:[%s387 + $0xe0] sm:$0xff] %v1335
      %1394 = vst.msk [vmem:[%s387 + $0xe8] sm:$0xff] %vm1366, %v1336
      %1395 = vst [vmem:[%s387 + $0xf0] sm:$0xff] %v1337
      %1396 = vst [vmem:[%s387 + $0xf8] sm:$0xff] %v1338
      %1397 = vst.msk [vmem:[%s387 + $0x100] sm:$0xff] %vm1366, %v1339
      %1398 = vst [vmem:[%s387 + $0x108] sm:$0xff] %v1340
      %1399 = vst [vmem:[%s387 + $0x110] sm:$0xff] %v1341
      %1400 = vst.msk [vmem:[%s387 + $0x118] sm:$0xff] %vm1366, %v1342
      %1401 = vst [vmem:[%s387 + $0x120] sm:$0xff] %v1343
      %1402 = vst [vmem:[%s387 + $0x128] sm:$0xff] %v1344
      %1403 = vst.msk [vmem:[%s387 + $0x130] sm:$0xff] %vm1366, %v1345
      %1404 = vst [vmem:[%s387 + $0x138] sm:$0xff] %v1346
      %1405 = vst [vmem:[%s387 + $0x140] sm:$0xff] %v1347
      %1406 = vst.msk [vmem:[%s387 + $0x148] sm:$0xff] %vm1366, %v1348
      %1407 = vst [vmem:[%s387 + $0x150] sm:$0xff] %v1349
      %1408 = vst [vmem:[%s387 + $0x158] sm:$0xff] %v1350
      %1409 = vst.msk [vmem:[%s387 + $0x160] sm:$0xff] %vm1366, %v1351
      %1410 = vst [vmem:[%s387 + $0x168] sm:$0xff] %v1352
      %1411 = vst [vmem:[%s387 + $0x170] sm:$0xff] %v1353
      %1412 = vst.msk [vmem:[%s387 + $0x178] sm:$0xff] %vm1366, %v1354
      %1413 = vst [vmem:[%s387 + $0x180] sm:$0xff] %v1355
      %1414 = vst [vmem:[%s387 + $0x188] sm:$0xff] %v1356
      %1415 = vst.msk [vmem:[%s387 + $0x190] sm:$0xff] %vm1366, %v1357
      %1416 = vst [vmem:[%s387 + $0x198] sm:$0xff] %v1358
      %1417 = vst [vmem:[%s387 + $0x1a0] sm:$0xff] %v1359
      %1418 = vst.msk [vmem:[%s387 + $0x1a8] sm:$0xff] %vm1366, %v1360
      %1419 = vst [vmem:[%s387 + $0x1b0] sm:$0xff] %v1361
      %1420 = vst [vmem:[%s387 + $0x1b8] sm:$0xff] %v1362
      %1421 = vst.msk [vmem:[%s387 + $0x1c0] sm:$0xff] %vm1366, %v1363
      %s1422 = smul.u32 19, %s23
      %s1423 = smul.u32 3, %s24
      %p1424 = scmp.lt.s32.totalorder %s22, 0
      %s1425 = scalar_select %p1424, %s22, 0
      %p1426 = scmp.lt.s32.totalorder %s1422, 37
      %s1427 = scalar_select %p1426, %s1422, 37
      %p1428 = scmp.lt.s32.totalorder %s1423, 2
      %s1429 = scalar_select %p1428, %s1423, 2
      %s1430 = smul.addr %s1427, 3
      %s1431 = sadd.s32 %s1429, %s1430
      %s1432 = smul.addr %s1425, 114
      %s1433 = sadd.s32 %s1431, %s1432
      %s1434 = smul.addr %s1433, 8
      %s1435 = scalar_lea.vmem %s5, %s1434
      // Predicated region
      $region41: #{tpu_custom_call.1} parent=39 // pred_check
        %p1436 = pneg %p191
      $region42: #{tpu_custom_call.1} parent=39 // pred_check_branch
        %1438 = sbr.rel (%p1436) target = $region44
      $region43: #{tpu_custom_call.1} parent=39 // pred_region
        %s1439 = smul.u32 19, %s23
        %s1440 = smul.u32 3, %s24
      $region44: #{tpu_custom_call.1} parent=39 // pred_fallthru
        _
    $region40: #{tpu_custom_call.1} parent=5 // pred_fallthru
      _
    %p1441 = scmp.le.s32.totalorder 2, %s12
    // Predicated region
    $region45: #{tpu_custom_call.1} parent=5 // pred_check
      %p1442 = pneg %p1441
    $region46: #{tpu_custom_call.1} parent=5 // pred_check_branch
      %1444 = sbr.rel (%p1442) target = $region48
    $region47: #{tpu_custom_call.1} parent=5 // pred_region
      %s1445 = ssub.s32 %s12, 2
      // Predicated region
      $region49: #{tpu_custom_call.1} parent=47 // pred_check
        %p1446 = pneg %p197
      $region50: #{tpu_custom_call.1} parent=47 // pred_check_branch
        %1448 = sbr.rel (%p1446) target = $region52
      $region51: #{tpu_custom_call.1} parent=47 // pred_region
        %s1449 = smul.u32 19, %s26
        %s1450 = smul.u32 3, %s27
        %p1451 = scmp.lt.s32.totalorder %s25, 0
        %s1452 = scalar_select %p1451, %s25, 0
        %p1453 = scmp.lt.s32.totalorder %s1449, 37
        %s1454 = scalar_select %p1453, %s1449, 37
        %p1455 = scmp.lt.s32.totalorder %s1450, 2
        %s1456 = scalar_select %p1455, %s1450, 2
        %s1457 = smul.addr %s1454, 3
        %s1458 = sadd.s32 %s1456, %s1457
        %s1459 = smul.addr %s1452, 114
        %s1460 = sadd.s32 %s1458, %s1459
        %s1461 = smul.addr %s1460, 8
        %s1462 = scalar_lea.vmem %s5, %s1461
      $region52: #{tpu_custom_call.1} parent=47 // pred_fallthru
        _
    $region48: #{tpu_custom_call.1} parent=5 // pred_fallthru
      _
  $region6: #{tpu_custom_call.1} parent=0 // loop_footer
    %s16 = sadd.s32 1, %s12
  $region7: #{tpu_custom_call.1} parent=0 // loop_footer_branch
    %11 = sbr.rel target = $region3
  $region8: #{tpu_custom_call.1} parent=0 // loop_exit
    _

</llo_original>
